<compile_context>
chip_gen: v5e
topology: v5e:2x2
jax: 0.10.0
libtpu: 0.0.40
codegen_flags: <defaults>
</compile_context>

<pallas_src>
import jax
import jax.numpy as jnp
from jax import lax
from jax.experimental import pallas as pl
from jax.experimental.pallas import tpu as pltpu

EPS = 1e-5
VMEM_LIMIT = 64 * 1024 * 1024       # scoped-VMEM cap for all pallas_calls
NEG_BIG = -1e30                     # bias of padded classifier lanes (exp -> 0)


# ------------------------------ small helpers --------------------------------

def _round_up(n, m):
    return ((n + m - 1) // m) * m


def _pick_tile(n, cap):
    """Row tile: n itself if small, else the largest power-of-two divisor <= cap (>=8)."""
    if n <= cap:
        return n
    c = cap
    while c >= 8:
        if n % c == 0:
            return c
        c //= 2
    return n


# --------------------------- fused BasicBlock kernel --------------------------

def _embed_block_kernel(x_ref, w1_ref, s1_ref, t1_ref, w2_ref, s2_ref, t2_ref,
                        wd_ref, sd_ref, td_ref, o_ref):
    # Per-batch fused BasicBlock (no residual add, per the reference forward):
    #   conv1(k3, valid)+bn1+relu -> conv2(k3, valid)+bn2 -> ds conv(k1)+bn -> relu
    # x_ref: (T, Cin) f32; conv weights are im2col matrices (bf16), consumed as
    # three per-tap sub-blocks so no lane-axis concat is materialized.
    x = x_ref[...]
    T, Cin = x.shape
    T1, T2 = T - 2, T - 4
    E = s1_ref.shape[1]

    xb = x.astype(jnp.bfloat16)
    # conv1: sum of 3 shifted matmuls, (T1, Cin) @ (Cin, E) each, f32 accumulate.
    y1 = jnp.dot(xb[0:T1], w1_ref[0:Cin, :], preferred_element_type=jnp.float32)
    y1 = y1 + jnp.dot(xb[1:T1 + 1], w1_ref[Cin:2 * Cin, :],
                      preferred_element_type=jnp.float32)
    y1 = y1 + jnp.dot(xb[2:T1 + 2], w1_ref[2 * Cin:3 * Cin, :],
                      preferred_element_type=jnp.float32)
    y1 = jnp.maximum(y1 * s1_ref[...] + t1_ref[...], 0.0)

    # conv2: sum of 3 shifted matmuls, (T2, E) @ (E, E) each.
    y1b = y1.astype(jnp.bfloat16)
    y2 = jnp.dot(y1b[0:T2], w2_ref[0:E, :], preferred_element_type=jnp.float32)
    y2 = y2 + jnp.dot(y1b[1:T2 + 1], w2_ref[E:2 * E, :],
                      preferred_element_type=jnp.float32)
    y2 = y2 + jnp.dot(y1b[2:T2 + 2], w2_ref[2 * E:3 * E, :],
                      preferred_element_type=jnp.float32)
    y2 = y2 * s2_ref[...] + t2_ref[...]

    # downsample 1x1 conv: (T2, E) @ (E, E), then bn + relu
    y3 = jnp.dot(y2.astype(jnp.bfloat16), wd_ref[...],
                 preferred_element_type=jnp.float32)
    y3 = jnp.maximum(y3 * sd_ref[...] + td_ref[...], 0.0)
    o_ref[...] = y3.astype(o_ref.dtype)


def embed_block(x, p):
    B, T, Cin = x.shape
    E = p["bn1_scale"].shape[1]
    Tout = T - 4
    const = lambda b: (0, 0)
    return pl.pallas_call(
        _embed_block_kernel,
        out_shape=jax.ShapeDtypeStruct((B, Tout, E), jnp.float32),
        grid=(B,),
        in_specs=[
            pl.BlockSpec((None, T, Cin), lambda b: (b, 0, 0)),
            pl.BlockSpec((3 * Cin, E), const),
            pl.BlockSpec((1, E), const),
            pl.BlockSpec((1, E), const),
            pl.BlockSpec((3 * E, E), const),
            pl.BlockSpec((1, E), const),
            pl.BlockSpec((1, E), const),
            pl.BlockSpec((E, E), const),
            pl.BlockSpec((1, E), const),
            pl.BlockSpec((1, E), const),
        ],
        out_specs=pl.BlockSpec((None, Tout, E), lambda b: (b, 0, 0)),
        compiler_params=pltpu.CompilerParams(
            dimension_semantics=("parallel",),
            vmem_limit_bytes=VMEM_LIMIT),
    )(x, p["conv1_w"], p["bn1_scale"], p["bn1_shift"],
      p["conv2_w"], p["bn2_scale"], p["bn2_shift"],
      p["ds_w"], p["bnds_scale"], p["bnds_shift"])


# ------------------------ LSTM: hoisted input projection ----------------------

def _lstm_proj_kernel(x_ref, wih_ref, b_ref, g_ref):
    # One big (rows, Cin) @ (Cin, 4H) matmul per tile; bias folded here so the
    # recurrent loop never re-broadcasts/adds it per timestep.
    xb = x_ref[...].astype(jnp.bfloat16)
    g_ref[...] = (jnp.dot(xb, wih_ref[...], preferred_element_type=jnp.float32)
                  + b_ref[...])


def lstm_input_proj(x_flat, wih, b, rows_tile):
    # x_flat: (N, Cin) f32; wih: (2, Cin, 4H) bf16; b: (2, 1, 4H) f32 -> (2, N, 4H) f32
    N, Cin = x_flat.shape
    G = wih.shape[2]
    return pl.pallas_call(
        _lstm_proj_kernel,
        out_shape=jax.ShapeDtypeStruct((2, N, G), jnp.float32),
        grid=(2, N // rows_tile),
        in_specs=[
            pl.BlockSpec((rows_tile, Cin), lambda d, r: (r, 0)),
            pl.BlockSpec((None, Cin, G), lambda d, r: (d, 0, 0)),
            pl.BlockSpec((None, 1, G), lambda d, r: (d, 0, 0)),
        ],
        out_specs=pl.BlockSpec((None, rows_tile, G), lambda d, r: (d, r, 0)),
        compiler_params=pltpu.CompilerParams(
            dimension_semantics=("parallel", "parallel"),
            vmem_limit_bytes=VMEM_LIMIT),
    )(x_flat, wih, b)


# -------------------- LSTM: fused bidirectional recurrence --------------------

def _lstm_rec_kernel(lens_ref, gates_ref, whh_ref, o_ref, h_scr, c_scr):
    # grid = (direction, time-chunk).  Per direction, h/c scratch carries across
    # time chunks ("arbitrary" axis); chunks are visited in reverse global order
    # for the backward direction (handled by the index_map).
    # lens_ref: (B, 1) i32, gates_ref: (TC, B, 4H) f32, whh_ref: (H, 4H) bf16,
    # o_ref: (TC, B, H) f32, h_scr/c_scr: (B, H) f32.
    d = pl.program_id(0)
    tc = pl.program_id(1)
    n_tc = pl.num_programs(1)
    TC = gates_ref.shape[0]
    H = whh_ref.shape[0]

    @pl.when(tc == 0)
    def _():
        h_scr[...] = jnp.zeros_like(h_scr)
        c_scr[...] = jnp.zeros_like(c_scr)

    chunk_idx = (1 - d) * tc + d * (n_tc - 1 - tc)      # global chunk position
    t_base = chunk_idx * TC
    lens = lens_ref[...]                                 # (B, 1) int32

    def step(s, carry):
        t_local = (1 - d) * s + d * (TC - 1 - s)         # fwd: 0..TC-1, bwd: TC-1..0
        t_global = t_base + t_local
        g = gates_ref[t_local] + jnp.dot(
            h_scr[...].astype(jnp.bfloat16), whh_ref[...],
            preferred_element_type=jnp.float32)          # (B, 4H)
        i_g = jax.nn.sigmoid(g[:, 0:H])                  # PyTorch gate order i,f,g,o
        f_g = jax.nn.sigmoid(g[:, H:2 * H])
        g_g = jnp.tanh(g[:, 2 * H:3 * H])
        o_g = jax.nn.sigmoid(g[:, 3 * H:4 * H])
        c_new = f_g * c_scr[...] + i_g * g_g
        h_new = o_g * jnp.tanh(c_new)
        # pack_padded semantics: zero state + output beyond each length.  For the
        # bwd direction this guarantees a zero initial state at position len-1.
        mask = (t_global < lens).astype(jnp.float32)     # (B, 1)
        h_new = h_new * mask
        c_new = c_new * mask
        h_scr[...] = h_new
        c_scr[...] = c_new
        o_ref[t_local] = h_new
        return carry

    # Unroll short chunks so the LLO scheduler can interleave across steps; keep
    # long chunks rolled to bound compile time.
    lax.fori_loop(0, TC, step, 0, unroll=bool(TC <= 32))


def lstm_bidir_recurrence(gates, whh, lens_col, t_chunk):
    # gates: (2, Tc_pad, B, 4H) f32; whh: (2, H, 4H) bf16 -> (2, Tc_pad, B, H) f32
    _, Tc_pad, B, G = gates.shape
    H = whh.shape[1]
    n_tc = Tc_pad // t_chunk

    def time_map(d, c):
        return (1 - d) * c + d * (n_tc - 1 - c)

    return pl.pallas_call(
        _lstm_rec_kernel,
        out_shape=jax.ShapeDtypeStruct((2, Tc_pad, B, H), jnp.float32),
        grid=(2, n_tc),
        in_specs=[
            pl.BlockSpec((B, 1), lambda d, c: (0, 0)),
            pl.BlockSpec((None, t_chunk, B, G),
                         lambda d, c: (d, time_map(d, c), 0, 0)),
            pl.BlockSpec((None, H, G), lambda d, c: (d, 0, 0)),
        ],
        out_specs=pl.BlockSpec((None, t_chunk, B, H),
                               lambda d, c: (d, time_map(d, c), 0, 0)),
        scratch_shapes=[pltpu.VMEM((B, H), jnp.float32),
                        pltpu.VMEM((B, H), jnp.float32)],
        compiler_params=pltpu.CompilerParams(
            dimension_semantics=("parallel", "arbitrary"),
            vmem_limit_bytes=VMEM_LIMIT),
    )(lens_col, gates, whh)


# ----------------------------------- head ------------------------------------

def _head_kernel(x_ref, w1_ref, b1_ref, s_ref, t_ref, w2_ref, b2_ref, o_ref):
    # linear1 -> BatchNorm1d(eval) -> ReLU -> cls_layer (padded to 128 lanes)
    # -> log_softmax.  dropout2 is identity at eval.
    h = (jnp.dot(x_ref[...].astype(jnp.bfloat16), w1_ref[...],
                 preferred_element_type=jnp.float32) + b1_ref[...])
    h = jnp.maximum(h * s_ref[...] + t_ref[...], 0.0)
    z = (jnp.dot(h.astype(jnp.bfloat16), w2_ref[...],
                 preferred_element_type=jnp.float32) + b2_ref[...])
    m = jnp.max(z, axis=-1, keepdims=True)
    lse = jnp.log(jnp.sum(jnp.exp(z - m), axis=-1, keepdims=True)) + m
    o_ref[...] = (z - lse).astype(o_ref.dtype)


def head(x, w1, b1, s, t, w2p, b2p, rows_tile):
    N, F = x.shape
    L1 = w1.shape[1]
    Cp = w2p.shape[1]
    const = lambda r: (0, 0)
    return pl.pallas_call(
        _head_kernel,
        out_shape=jax.ShapeDtypeStruct((N, Cp), jnp.float32),
        grid=(N // rows_tile,),
        in_specs=[
            pl.BlockSpec((rows_tile, F), lambda r: (r, 0)),
            pl.BlockSpec((F, L1), const),
            pl.BlockSpec((1, L1), const),
            pl.BlockSpec((1, L1), const),
            pl.BlockSpec((1, L1), const),
            pl.BlockSpec((L1, Cp), const),
            pl.BlockSpec((1, Cp), const),
        ],
        out_specs=pl.BlockSpec((rows_tile, Cp), lambda r: (r, 0)),
        compiler_params=pltpu.CompilerParams(
            dimension_semantics=("parallel",),
            vmem_limit_bytes=VMEM_LIMIT),
    )(x, w1, b1, s, t, w2p, b2p)


# -------------------------------- parameters ----------------------------------

def bn_affine(key, c):
    k1, k2 = jax.random.split(key)
    gamma = 1.0 + 0.1 * jax.random.normal(k1, (c,), jnp.float32)
    beta = 0.1 * jax.random.normal(k2, (c,), jnp.float32)
    running_mean = jnp.zeros((c,), jnp.float32)
    running_var = jnp.ones((c,), jnp.float32)
    scale = gamma / jnp.sqrt(running_var + EPS)
    shift = beta - running_mean * scale
    return scale.reshape(1, c), shift.reshape(1, c)


def init_params(key, input_size, output_size, emb=256, hidden=256,
                num_layers=4, lin1=2048):
    ks = iter(jax.random.split(key, 64))
    p = {"hidden": hidden, "output_size": output_size}

    def nrm(shape, std, dtype=jnp.float32):
        return (std * jax.random.normal(next(ks), shape, jnp.float32)).astype(dtype)

    # BasicBlock weights, pre-reshaped to im2col layout; bf16 for the MXU.
    p["conv1_w"] = nrm((3 * input_size, emb), (3 * input_size) ** -0.5, jnp.bfloat16)
    p["bn1_scale"], p["bn1_shift"] = bn_affine(next(ks), emb)
    p["conv2_w"] = nrm((3 * emb, emb), (3 * emb) ** -0.5, jnp.bfloat16)
    p["bn2_scale"], p["bn2_shift"] = bn_affine(next(ks), emb)
    p["ds_w"] = nrm((emb, emb), emb ** -0.5, jnp.bfloat16)
    p["bnds_scale"], p["bnds_shift"] = bn_affine(next(ks), emb)

    # 4-layer bidirectional LSTM; fwd/bwd weights stacked along a leading axis of 2.
    stdv = hidden ** -0.5
    layers = []
    for layer_idx in range(num_layers):
        cin = emb if layer_idx == 0 else 2 * hidden
        layers.append(dict(
            wih=nrm((2, cin, 4 * hidden), stdv, jnp.bfloat16),   # weight_ih.T [fwd,bwd]
            whh=nrm((2, hidden, 4 * hidden), stdv, jnp.bfloat16),
            b=nrm((2, 1, 4 * hidden), stdv),                     # bias_ih + bias_hh
        ))
    p["lstm"] = layers

    # Head: linear1 + BN; classifier padded to 128 lanes for lane-dense stores.
    p["w1"] = nrm((2 * hidden, lin1), (2 * hidden) ** -0.5, jnp.bfloat16)
    p["b1"] = nrm((1, lin1), 0.01)
    p["bnl_scale"], p["bnl_shift"] = bn_affine(next(ks), lin1)
    cpad = _round_up(max(output_size, 128), 128)
    w2 = nrm((lin1, output_size), lin1 ** -0.5)
    b2 = nrm((1, output_size), 0.01)
    p["w2p"] = jnp.concatenate(
        [w2, jnp.zeros((lin1, cpad - output_size), jnp.float32)],
        axis=1).astype(jnp.bfloat16)
    p["b2p"] = jnp.concatenate(
        [b2, jnp.full((1, cpad - output_size), NEG_BIG, jnp.float32)], axis=1)
    return p


# --------------------------------- forward ------------------------------------

def forward(params, x, lx):
    # x: (B, T, input_size) f32, lx: (B,) int32 valid lengths
    B, T, _ = x.shape
    H = params["hidden"]
    out_size = params["output_size"]

    # embedding1 (fused BasicBlock), channel-last
    h = embed_block(x, params)                            # (B, T-4, E)
    Tc = T - 4
    lengths = lx - 4                                       # shape_diff = (T-4) - T = -4

    # Time-major for the recurrence.  Pad time to a static chunk multiple so we
    # never host-sync on max(lx); padded steps are masked by `lengths` in-kernel.
    t_chunk = _round_up(Tc, 8) if Tc <= 128 else 128
    Tc_pad = _round_up(Tc, t_chunk)
    seq = jnp.transpose(h, (1, 0, 2))                      # (Tc, B, E)
    seq = jnp.pad(seq, ((0, Tc_pad - Tc), (0, 0), (0, 0)))
    lens_col = lengths.astype(jnp.int32).reshape(B, 1)

    for layer in params["lstm"]:
        Cin = seq.shape[-1]
        x_flat = seq.reshape(Tc_pad * B, Cin)
        rows_tile = _pick_tile(Tc_pad * B, 512)
        gates = lstm_input_proj(x_flat, layer["wih"], layer["b"], rows_tile)
        gates = gates.reshape(2, Tc_pad, B, 4 * H)
        outs = lstm_bidir_recurrence(gates, layer["whh"], lens_col, t_chunk)
        seq = jnp.concatenate([outs[0], outs[1]], axis=-1)  # (Tc_pad, B, 2H)
        # dropout_rnn between layers: identity at eval

    # Positions >= length are already exact zeros (masked in-kernel), matching
    # pad_packed_sequence's zero padding before linear1.
    flat = jnp.transpose(seq, (1, 0, 2)).reshape(B * Tc_pad, 2 * H)
    rows_tile = _pick_tile(B * Tc_pad, 256)
    logp = head(flat, params["w1"], params["b1"], params["bnl_scale"],
                params["bnl_shift"], params["w2p"], params["b2p"], rows_tile)
    out = logp.reshape(B, Tc_pad, -1)[:, :Tc, :out_size]
    # TODO(synk): output time extent is the static T-4 (equals max(lx)-4 whenever
    # the longest sequence spans T, as in the test); a dynamic max(lx)-4 extent
    # would require a host sync which the review asked to remove.
    return out, lengths


# ----------------------------------- main --------------------------------------

if __name__ == "__main__":
    key = jax.random.PRNGKey(0)
    B, T, input_size, output_size = 2, 16, 16, 8
    kx, kp = jax.random.split(key)

    x = jax.random.normal(kx, (B, T, input_size), jnp.float32)
    lx = jnp.array([16, 12], dtype=jnp.int32)

    params = init_params(kp, input_size, output_size)
    out, lengths = forward(params, x, lx)
    out = jax.block_until_ready(out)

    assert out.shape == (B, T - 4, output_size), out.shape
    assert bool(jnp.all(jnp.isfinite(out)))
    # log_softmax sanity: rows sum to 1 in prob space (padded lanes contribute ~0)
    assert bool(jnp.allclose(jnp.sum(jnp.exp(out), axis=-1), 1.0, atol=1e-3))
    print("KERNEL_OK")
</pallas_src>

<mosaic_0001>
module attributes {stable_mosaic.version = 11 : i64} {
  func.func @_embed_block_kernel(%arg0: i32, %arg1: memref<1x16x16xf32, #tpu.memory_space<vmem>>, %arg2: memref<48x256xbf16, #tpu.memory_space<vmem>>, %arg3: memref<1x256xf32, #tpu.memory_space<vmem>>, %arg4: memref<1x256xf32, #tpu.memory_space<vmem>>, %arg5: memref<768x256xbf16, #tpu.memory_space<vmem>>, %arg6: memref<1x256xf32, #tpu.memory_space<vmem>>, %arg7: memref<1x256xf32, #tpu.memory_space<vmem>>, %arg8: memref<256x256xbf16, #tpu.memory_space<vmem>>, %arg9: memref<1x256xf32, #tpu.memory_space<vmem>>, %arg10: memref<1x256xf32, #tpu.memory_space<vmem>>, %arg11: memref<1x12x256xf32, #tpu.memory_space<vmem>>) attributes {dimension_semantics = [#tpu.dimension_semantics<parallel>], iteration_bounds = array<i64: 2>, scalar_prefetch = 0 : i64, scratch_operands = 0 : i64, tpu.core_type = #tpu.core_type<tc>, window_params = [{transform_indices = @transform_0, window_bounds = array<i64: 1, 16, 16>}, {pipeline_mode = #tpu.pipeline_mode<synchronous>, transform_indices = @transform_1, window_bounds = array<i64: 48, 256>}, {pipeline_mode = #tpu.pipeline_mode<synchronous>, transform_indices = @transform_2, window_bounds = array<i64: 1, 256>}, {pipeline_mode = #tpu.pipeline_mode<synchronous>, transform_indices = @transform_3, window_bounds = array<i64: 1, 256>}, {pipeline_mode = #tpu.pipeline_mode<synchronous>, transform_indices = @transform_4, window_bounds = array<i64: 768, 256>}, {pipeline_mode = #tpu.pipeline_mode<synchronous>, transform_indices = @transform_5, window_bounds = array<i64: 1, 256>}, {pipeline_mode = #tpu.pipeline_mode<synchronous>, transform_indices = @transform_6, window_bounds = array<i64: 1, 256>}, {pipeline_mode = #tpu.pipeline_mode<synchronous>, transform_indices = @transform_7, window_bounds = array<i64: 256, 256>}, {pipeline_mode = #tpu.pipeline_mode<synchronous>, transform_indices = @transform_8, window_bounds = array<i64: 1, 256>}, {pipeline_mode = #tpu.pipeline_mode<synchronous>, transform_indices = @transform_9, window_bounds = array<i64: 1, 256>}, {transform_indices = @transform_10, window_bounds = array<i64: 1, 12, 256>}]} {
    %c0 = arith.constant 0 : index
    %c0_0 = arith.constant 0 : index
    %c0_1 = arith.constant 0 : index
    %0 = vector.load %arg1[%c0, %c0_0, %c0_1] : memref<1x16x16xf32, #tpu.memory_space<vmem>>, vector<1x16x16xf32>
    %1 = vector.shape_cast %0 : vector<1x16x16xf32> to vector<16x16xf32>
    %2 = arith.truncf %1 : vector<16x16xf32> to vector<16x16xbf16>
    %3 = vector.extract_strided_slice %2 {offsets = [0, 0], sizes = [14, 16], strides = [1, 1]} : vector<16x16xbf16> to vector<14x16xbf16>
    %c0_2 = arith.constant 0 : index
    %c0_3 = arith.constant 0 : index
    %4 = vector.load %arg2[%c0_2, %c0_3] : memref<48x256xbf16, #tpu.memory_space<vmem>>, vector<16x256xbf16>
    %cst = arith.constant dense<0.000000e+00> : vector<14x256xf32>
    %5 = tpu.matmul %3, %4, %cst {dimension_numbers = #tpu.dot_dimension_numbers<[1], [0], [0], [1], [0, 0, 1, 1], [], []>} : vector<14x16xbf16>, vector<16x256xbf16>, vector<14x256xf32> -> vector<14x256xf32>
    %6 = vector.extract_strided_slice %2 {offsets = [1, 0], sizes = [14, 16], strides = [1, 1]} : vector<16x16xbf16> to vector<14x16xbf16>
    %c16 = arith.constant 16 : index
    %c0_4 = arith.constant 0 : index
    %7 = vector.load %arg2[%c16, %c0_4] : memref<48x256xbf16, #tpu.memory_space<vmem>>, vector<16x256xbf16>
    %cst_5 = arith.constant dense<0.000000e+00> : vector<14x256xf32>
    %8 = tpu.matmul %6, %7, %cst_5 {dimension_numbers = #tpu.dot_dimension_numbers<[1], [0], [0], [1], [0, 0, 1, 1], [], []>} : vector<14x16xbf16>, vector<16x256xbf16>, vector<14x256xf32> -> vector<14x256xf32>
    %9 = arith.addf %5, %8 : vector<14x256xf32>
    %10 = vector.extract_strided_slice %2 {offsets = [2, 0], sizes = [14, 16], strides = [1, 1]} : vector<16x16xbf16> to vector<14x16xbf16>
    %c32 = arith.constant 32 : index
    %c0_6 = arith.constant 0 : index
    %11 = vector.load %arg2[%c32, %c0_6] : memref<48x256xbf16, #tpu.memory_space<vmem>>, vector<16x256xbf16>
    %cst_7 = arith.constant dense<0.000000e+00> : vector<14x256xf32>
    %12 = tpu.matmul %10, %11, %cst_7 {dimension_numbers = #tpu.dot_dimension_numbers<[1], [0], [0], [1], [0, 0, 1, 1], [], []>} : vector<14x16xbf16>, vector<16x256xbf16>, vector<14x256xf32> -> vector<14x256xf32>
    %13 = arith.addf %9, %12 : vector<14x256xf32>
    %c0_8 = arith.constant 0 : index
    %c0_9 = arith.constant 0 : index
    %14 = vector.load %arg3[%c0_8, %c0_9] : memref<1x256xf32, #tpu.memory_space<vmem>>, vector<1x256xf32>
    %15 = vector.broadcast %14 : vector<1x256xf32> to vector<14x256xf32>
    %16 = arith.mulf %13, %15 : vector<14x256xf32>
    %c0_10 = arith.constant 0 : index
    %c0_11 = arith.constant 0 : index
    %17 = vector.load %arg4[%c0_10, %c0_11] : memref<1x256xf32, #tpu.memory_space<vmem>>, vector<1x256xf32>
    %18 = vector.broadcast %17 : vector<1x256xf32> to vector<14x256xf32>
    %19 = arith.addf %16, %18 : vector<14x256xf32>
    %cst_12 = arith.constant 0.000000e+00 : f32
    %20 = vector.broadcast %cst_12 : f32 to vector<14x256xf32>
    %21 = arith.maximumf %19, %20 : vector<14x256xf32>
    %22 = arith.truncf %21 : vector<14x256xf32> to vector<14x256xbf16>
    %23 = vector.extract_strided_slice %22 {offsets = [0, 0], sizes = [12, 256], strides = [1, 1]} : vector<14x256xbf16> to vector<12x256xbf16>
    %c0_13 = arith.constant 0 : index
    %c0_14 = arith.constant 0 : index
    %24 = vector.load %arg5[%c0_13, %c0_14] : memref<768x256xbf16, #tpu.memory_space<vmem>>, vector<256x256xbf16>
    %cst_15 = arith.constant dense<0.000000e+00> : vector<12x256xf32>
    %25 = tpu.matmul %23, %24, %cst_15 {dimension_numbers = #tpu.dot_dimension_numbers<[1], [0], [0], [1], [0, 0, 1, 1], [], []>} : vector<12x256xbf16>, vector<256x256xbf16>, vector<12x256xf32> -> vector<12x256xf32>
    %26 = vector.extract_strided_slice %22 {offsets = [1, 0], sizes = [12, 256], strides = [1, 1]} : vector<14x256xbf16> to vector<12x256xbf16>
    %c256 = arith.constant 256 : index
    %c0_16 = arith.constant 0 : index
    %27 = vector.load %arg5[%c256, %c0_16] : memref<768x256xbf16, #tpu.memory_space<vmem>>, vector<256x256xbf16>
    %cst_17 = arith.constant dense<0.000000e+00> : vector<12x256xf32>
    %28 = tpu.matmul %26, %27, %cst_17 {dimension_numbers = #tpu.dot_dimension_numbers<[1], [0], [0], [1], [0, 0, 1, 1], [], []>} : vector<12x256xbf16>, vector<256x256xbf16>, vector<12x256xf32> -> vector<12x256xf32>
    %29 = arith.addf %25, %28 : vector<12x256xf32>
    %30 = vector.extract_strided_slice %22 {offsets = [2, 0], sizes = [12, 256], strides = [1, 1]} : vector<14x256xbf16> to vector<12x256xbf16>
    %c512 = arith.constant 512 : index
    %c0_18 = arith.constant 0 : index
    %31 = vector.load %arg5[%c512, %c0_18] : memref<768x256xbf16, #tpu.memory_space<vmem>>, vector<256x256xbf16>
    %cst_19 = arith.constant dense<0.000000e+00> : vector<12x256xf32>
    %32 = tpu.matmul %30, %31, %cst_19 {dimension_numbers = #tpu.dot_dimension_numbers<[1], [0], [0], [1], [0, 0, 1, 1], [], []>} : vector<12x256xbf16>, vector<256x256xbf16>, vector<12x256xf32> -> vector<12x256xf32>
    %33 = arith.addf %29, %32 : vector<12x256xf32>
    %c0_20 = arith.constant 0 : index
    %c0_21 = arith.constant 0 : index
    %34 = vector.load %arg6[%c0_20, %c0_21] : memref<1x256xf32, #tpu.memory_space<vmem>>, vector<1x256xf32>
    %35 = vector.broadcast %34 : vector<1x256xf32> to vector<12x256xf32>
    %36 = arith.mulf %33, %35 : vector<12x256xf32>
    %c0_22 = arith.constant 0 : index
    %c0_23 = arith.constant 0 : index
    %37 = vector.load %arg7[%c0_22, %c0_23] : memref<1x256xf32, #tpu.memory_space<vmem>>, vector<1x256xf32>
    %38 = vector.broadcast %37 : vector<1x256xf32> to vector<12x256xf32>
    %39 = arith.addf %36, %38 : vector<12x256xf32>
    %40 = arith.truncf %39 : vector<12x256xf32> to vector<12x256xbf16>
    %c0_24 = arith.constant 0 : index
    %c0_25 = arith.constant 0 : index
    %41 = vector.load %arg8[%c0_24, %c0_25] : memref<256x256xbf16, #tpu.memory_space<vmem>>, vector<256x256xbf16>
    %cst_26 = arith.constant dense<0.000000e+00> : vector<12x256xf32>
    %42 = tpu.matmul %40, %41, %cst_26 {dimension_numbers = #tpu.dot_dimension_numbers<[1], [0], [0], [1], [0, 0, 1, 1], [], []>} : vector<12x256xbf16>, vector<256x256xbf16>, vector<12x256xf32> -> vector<12x256xf32>
    %c0_27 = arith.constant 0 : index
    %c0_28 = arith.constant 0 : index
    %43 = vector.load %arg9[%c0_27, %c0_28] : memref<1x256xf32, #tpu.memory_space<vmem>>, vector<1x256xf32>
    %44 = vector.broadcast %43 : vector<1x256xf32> to vector<12x256xf32>
    %45 = arith.mulf %42, %44 : vector<12x256xf32>
    %c0_29 = arith.constant 0 : index
    %c0_30 = arith.constant 0 : index
    %46 = vector.load %arg10[%c0_29, %c0_30] : memref<1x256xf32, #tpu.memory_space<vmem>>, vector<1x256xf32>
    %47 = vector.broadcast %46 : vector<1x256xf32> to vector<12x256xf32>
    %48 = arith.addf %45, %47 : vector<12x256xf32>
    %cst_31 = arith.constant 0.000000e+00 : f32
    %49 = vector.broadcast %cst_31 : f32 to vector<12x256xf32>
    %50 = arith.maximumf %48, %49 : vector<12x256xf32>
    %c0_32 = arith.constant 0 : index
    %c0_33 = arith.constant 0 : index
    %c0_34 = arith.constant 0 : index
    %51 = vector.load %arg11[%c0_32, %c0_33, %c0_34] : memref<1x12x256xf32, #tpu.memory_space<vmem>>, vector<1x12x256xf32>
    %52 = vector.shape_cast %51 : vector<1x12x256xf32> to vector<12x256xf32>
    %53 = vector.shape_cast %50 : vector<12x256xf32> to vector<1x12x256xf32>
    tpu.vector_store %arg11[%c0_32, %c0_33, %c0_34], %53 {strides = array<i32>} : memref<1x12x256xf32, #tpu.memory_space<vmem>>, vector<1x12x256xf32>,
    return
  }
  func.func @transform_0(%arg0: i32) -> (i32, i32, i32) {
    %c0_i32 = arith.constant 0 : i32
    %c0_i32_0 = arith.constant 0 : i32
    %c0_i32_1 = arith.constant 0 : i32
    return %arg0, %c0_i32, %c0_i32_0 : i32, i32, i32
  }
  func.func @transform_1(%arg0: i32) -> (i32, i32) {
    %c0_i32 = arith.constant 0 : i32
    %c0_i32_0 = arith.constant 0 : i32
    %c0_i32_1 = arith.constant 0 : i32
    return %c0_i32, %c0_i32_0 : i32, i32
  }
  func.func @transform_2(%arg0: i32) -> (i32, i32) {
    %c0_i32 = arith.constant 0 : i32
    %c0_i32_0 = arith.constant 0 : i32
    %c0_i32_1 = arith.constant 0 : i32
    return %c0_i32, %c0_i32_0 : i32, i32
  }
  func.func @transform_3(%arg0: i32) -> (i32, i32) {
    %c0_i32 = arith.constant 0 : i32
    %c0_i32_0 = arith.constant 0 : i32
    %c0_i32_1 = arith.constant 0 : i32
    return %c0_i32, %c0_i32_0 : i32, i32
  }
  func.func @transform_4(%arg0: i32) -> (i32, i32) {
    %c0_i32 = arith.constant 0 : i32
    %c0_i32_0 = arith.constant 0 : i32
    %c0_i32_1 = arith.constant 0 : i32
    return %c0_i32, %c0_i32_0 : i32, i32
  }
  func.func @transform_5(%arg0: i32) -> (i32, i32) {
    %c0_i32 = arith.constant 0 : i32
    %c0_i32_0 = arith.constant 0 : i32
    %c0_i32_1 = arith.constant 0 : i32
    return %c0_i32, %c0_i32_0 : i32, i32
  }
  func.func @transform_6(%arg0: i32) -> (i32, i32) {
    %c0_i32 = arith.constant 0 : i32
    %c0_i32_0 = arith.constant 0 : i32
    %c0_i32_1 = arith.constant 0 : i32
    return %c0_i32, %c0_i32_0 : i32, i32
  }
  func.func @transform_7(%arg0: i32) -> (i32, i32) {
    %c0_i32 = arith.constant 0 : i32
    %c0_i32_0 = arith.constant 0 : i32
    %c0_i32_1 = arith.constant 0 : i32
    return %c0_i32, %c0_i32_0 : i32, i32
  }
  func.func @transform_8(%arg0: i32) -> (i32, i32) {
    %c0_i32 = arith.constant 0 : i32
    %c0_i32_0 = arith.constant 0 : i32
    %c0_i32_1 = arith.constant 0 : i32
    return %c0_i32, %c0_i32_0 : i32, i32
  }
  func.func @transform_9(%arg0: i32) -> (i32, i32) {
    %c0_i32 = arith.constant 0 : i32
    %c0_i32_0 = arith.constant 0 : i32
    %c0_i32_1 = arith.constant 0 : i32
    return %c0_i32, %c0_i32_0 : i32, i32
  }
  func.func @transform_10(%arg0: i32) -> (i32, i32, i32) {
    %c0_i32 = arith.constant 0 : i32
    %c0_i32_0 = arith.constant 0 : i32
    %c0_i32_1 = arith.constant 0 : i32
    return %arg0, %c0_i32, %c0_i32_0 : i32, i32, i32
  }
}

</mosaic_0001>

<llo_original>
// kernel: tpu_custom_call.1
$region0: #{tpu_custom_call.1}
  #allocation0 [shape = 'u32[]', space=smem, size = 0x4, offset = 0x4, fixed_abs, tag = 'smem constant byte address 0x4 - core index']
  #allocation1 [shape = 'u32[72,128]{1,0:T(1,128)}', space=vmem, size = 0x9000, scoped, tag = 'internal scratch']
  %s0 = inlined_call_operand.hbm [shape: f32[2,16,16], index: 0, kind: input, shape index: {}]
  %s1 = inlined_call_operand.hbm [shape: bf16[48,256], index: 1, kind: input, shape index: {}]
  %s2 = inlined_call_operand.hbm [shape: f32[1,256], index: 2, kind: input, shape index: {}]
  %s3 = inlined_call_operand.vmem [shape: f32[1,256], index: 3, kind: input, shape index: {}]
  %s4 = inlined_call_operand.hbm [shape: bf16[768,256], index: 4, kind: input, shape index: {}]
  %s5 = inlined_call_operand.vmem [shape: f32[1,256], index: 5, kind: input, shape index: {}]
  %s6 = inlined_call_operand.hbm [shape: f32[1,256], index: 6, kind: input, shape index: {}]
  %s7 = inlined_call_operand.hbm [shape: bf16[256,256], index: 7, kind: input, shape index: {}]
  %s8 = inlined_call_operand.vmem [shape: f32[1,256], index: 8, kind: input, shape index: {}]
  %s9 = inlined_call_operand.vmem [shape: f32[1,256], index: 9, kind: input, shape index: {}]
  %s10 = inlined_call_operand.vmem [shape: f32[2,12,256], index: 10, kind: output, shape index: {}]
  %s11 = sld [smem:[#allocation0]]
  $region97: #{tpu_custom_call.1} parent=0
    _
  %s13 = ssub.s32 1, %s11
  %s14 = scalar_select 0, %s13, %s11
  $region1: #{tpu_custom_call.1} parent=0
    #allocation2 [shape = 'u8[16384]{0}', space=vmem, size = 0x4000, scoped, tag = 'input window, operand 0']
    #allocation3 [shape = 's32[2]{0}', space=sflag, size = 0x8, scoped, tag = 'scoped memory for tpu_custom_call.1']
    #allocation4 [shape = 'u8[24576]{0}', space=vmem, size = 0x6000, scoped, tag = 'input window, operand 1, single buffered']
    #allocation5 [shape = 's32[1]{0}', space=sflag, size = 0x4, scoped, tag = 'scoped memory for tpu_custom_call.1']
    #allocation6 [shape = 'u8[1024]{0}', space=vmem, size = 0x400, scoped, tag = 'input window, operand 2, single buffered']
    #allocation7 [shape = 'u8[393216]{0}', space=vmem, size = 0x60000, scoped, tag = 'input window, operand 4, single buffered']
    #allocation8 [shape = 's32[1]{0}', space=sflag, size = 0x4, scoped, tag = 'scoped memory for tpu_custom_call.1']
    #allocation9 [shape = 'u8[1024]{0}', space=vmem, size = 0x400, scoped, tag = 'input window, operand 6, single buffered']
    #allocation10 [shape = 'u8[131072]{0}', space=vmem, size = 0x20000, scoped, tag = 'input window, operand 7, single buffered']
    #allocation11 [shape = 's32[1]{0}', space=sflag, size = 0x4, scoped, tag = 'scoped memory for tpu_custom_call.1']
    %15 = vsyncpa [#allocation3], 0
    %s16 = scalar_lea.sflag [#allocation3], 1
    %17 = vsyncpa %s16, 0
    %18 = vsyncpa [#allocation5], 0
    %19 = vsyncpa [#allocation8], 0
    %20 = vsyncpa [#allocation11], 0
    loop: start=0, step=1, limit=4
    $region2: #{tpu_custom_call.1} parent=1 // loop_pre_header
      _
    $region3: #{tpu_custom_call.1} parent=1 // loop_header
      %s22 = sphi 0, %s26
      %p23 = scmp.ge.s32.totalorder %s22, 4
      %s32 = sphi 0, %s34
      %s35 = sphi 0, %s32
      %s36 = sphi 0, %s35
      %s52 = sphi 0, %s36
      %s56 = sphi 0, %s56
      %s58 = sphi 0, %s56
      %s59 = sphi 0, %s58
      %s73 = sphi 0, %s59
      %s77 = sphi 0, %s77
      %s79 = sphi 0, %s77
      %s80 = sphi 0, %s79
      %s94 = sphi 0, %s80
      %s98 = sphi 0, %s98
      %s100 = sphi 0, %s98
      %s101 = sphi 0, %s100
      %s115 = sphi 0, %s101
      %s119 = sphi 0, %s119
      %s121 = sphi 0, %s119
      %s122 = sphi 0, %s121
      %s136 = sphi 0, %s122
      %s140 = sphi 0, %s140
      %s142 = sphi 0, %s140
      %s143 = sphi 0, %s142
      %s157 = sphi 0, %s143
      %s161 = sphi 0, %s161
      %s163 = sphi 0, %s161
      %s164 = sphi 0, %s163
      %s178 = sphi 0, %s164
      %s182 = sphi 0, %s182
      %s184 = sphi 0, %s182
      %s185 = sphi 0, %s184
      %s199 = sphi 0, %s185
      %s203 = sphi 0, %s203
      %s205 = sphi 0, %s203
      %s206 = sphi 0, %s205
      %s220 = sphi 0, %s206
      %s224 = sphi 0, %s224
      %s226 = sphi 0, %s224
      %s227 = sphi 0, %s226
      %s241 = sphi 0, %s227
      %s247 = sphi 0, %s249
      %s250 = sphi 0, %s247
      %s251 = sphi 0, %s250
      %s267 = sphi 0, %s251
    $region4: #{tpu_custom_call.1} parent=1 // loop_header_branch
      %25 = sbr.rel (%p23) target = $region8
    $region5: #{tpu_custom_call.1} parent=1 // loop_body
      %s27 = ssub.s32 %s22, 1
      %s28 = ssub.s32 %s22, 2
      %s29 = sadd.s32 %s22, 1
      %s30 = ssub.s32 %s22, %s29
      %p31 = scmp.eq.s32.totalorder %s30, 0
      %s33 = sadd.s32 %s32, 1
      %s34 = scalar_select %p31, %s32, %s33
      %p37 = pneg %p31
      %p38 = scmp.eq.s32.totalorder %s22, 1
      %p39 = por %p37, %p38
      %p40 = scmp.ne.s32.totalorder %s32, %s35
      %p41 = scmp.eq.s32.totalorder %s22, 0
      %p42 = por %p40, %p41
      %p43 = scmp.ne.s32.totalorder %s32, %s35
      %p44 = scmp.eq.s32.totalorder %s27, 1
      %p45 = por %p43, %p44
      %p46 = scmp.ne.s32.totalorder %s35, %s36
      %p47 = scmp.eq.s32.totalorder %s27, 0
      %p48 = por %p46, %p47
      %p49 = scmp.ne.s32.totalorder %s35, %s36
      %p50 = scmp.eq.s32.totalorder %s28, 1
      %p51 = por %p49, %p50
      %p53 = scmp.ne.s32.totalorder %s36, %s52
      %p54 = scmp.eq.s32.totalorder %s28, 0
      %p55 = por %p53, %p54
      %s57 = sadd.s32 %s56, 1
      %p60 = scmp.eq.s32.totalorder %s22, 1
      %p61 = scmp.ne.s32.totalorder %s56, %s58
      %p62 = scmp.eq.s32.totalorder %s22, 0
      %p63 = por %p61, %p62
      %p64 = scmp.ne.s32.totalorder %s56, %s58
      %p65 = scmp.eq.s32.totalorder %s27, 1
      %p66 = por %p64, %p65
      %p67 = scmp.ne.s32.totalorder %s58, %s59
      %p68 = scmp.eq.s32.totalorder %s27, 0
      %p69 = por %p67, %p68
      %p70 = scmp.ne.s32.totalorder %s58, %s59
      %p71 = scmp.eq.s32.totalorder %s28, 1
      %p72 = por %p70, %p71
      %p74 = scmp.ne.s32.totalorder %s59, %s73
      %p75 = scmp.eq.s32.totalorder %s28, 0
      %p76 = por %p74, %p75
      %s78 = sadd.s32 %s77, 1
      %p81 = scmp.eq.s32.totalorder %s22, 1
      %p82 = scmp.ne.s32.totalorder %s77, %s79
      %p83 = scmp.eq.s32.totalorder %s22, 0
      %p84 = por %p82, %p83
      %p85 = scmp.ne.s32.totalorder %s77, %s79
      %p86 = scmp.eq.s32.totalorder %s27, 1
      %p87 = por %p85, %p86
      %p88 = scmp.ne.s32.totalorder %s79, %s80
      %p89 = scmp.eq.s32.totalorder %s27, 0
      %p90 = por %p88, %p89
      %p91 = scmp.ne.s32.totalorder %s79, %s80
      %p92 = scmp.eq.s32.totalorder %s28, 1
      %p93 = por %p91, %p92
      %p95 = scmp.ne.s32.totalorder %s80, %s94
      %p96 = scmp.eq.s32.totalorder %s28, 0
      %p97 = por %p95, %p96
      %s99 = sadd.s32 %s98, 1
      %p102 = scmp.eq.s32.totalorder %s22, 1
      %p103 = scmp.ne.s32.totalorder %s98, %s100
      %p104 = scmp.eq.s32.totalorder %s22, 0
      %p105 = por %p103, %p104
      %p106 = scmp.ne.s32.totalorder %s98, %s100
      %p107 = scmp.eq.s32.totalorder %s27, 1
      %p108 = por %p106, %p107
      %p109 = scmp.ne.s32.totalorder %s100, %s101
      %p110 = scmp.eq.s32.totalorder %s27, 0
      %p111 = por %p109, %p110
      %p112 = scmp.ne.s32.totalorder %s100, %s101
      %p113 = scmp.eq.s32.totalorder %s28, 1
      %p114 = por %p112, %p113
      %p116 = scmp.ne.s32.totalorder %s101, %s115
      %p117 = scmp.eq.s32.totalorder %s28, 0
      %p118 = por %p116, %p117
      %s120 = sadd.s32 %s119, 1
      %p123 = scmp.eq.s32.totalorder %s22, 1
      %p124 = scmp.ne.s32.totalorder %s119, %s121
      %p125 = scmp.eq.s32.totalorder %s22, 0
      %p126 = por %p124, %p125
      %p127 = scmp.ne.s32.totalorder %s119, %s121
      %p128 = scmp.eq.s32.totalorder %s27, 1
      %p129 = por %p127, %p128
      %p130 = scmp.ne.s32.totalorder %s121, %s122
      %p131 = scmp.eq.s32.totalorder %s27, 0
      %p132 = por %p130, %p131
      %p133 = scmp.ne.s32.totalorder %s121, %s122
      %p134 = scmp.eq.s32.totalorder %s28, 1
      %p135 = por %p133, %p134
      %p137 = scmp.ne.s32.totalorder %s122, %s136
      %p138 = scmp.eq.s32.totalorder %s28, 0
      %p139 = por %p137, %p138
      %s141 = sadd.s32 %s140, 1
      %p144 = scmp.eq.s32.totalorder %s22, 1
      %p145 = scmp.ne.s32.totalorder %s140, %s142
      %p146 = scmp.eq.s32.totalorder %s22, 0
      %p147 = por %p145, %p146
      %p148 = scmp.ne.s32.totalorder %s140, %s142
      %p149 = scmp.eq.s32.totalorder %s27, 1
      %p150 = por %p148, %p149
      %p151 = scmp.ne.s32.totalorder %s142, %s143
      %p152 = scmp.eq.s32.totalorder %s27, 0
      %p153 = por %p151, %p152
      %p154 = scmp.ne.s32.totalorder %s142, %s143
      %p155 = scmp.eq.s32.totalorder %s28, 1
      %p156 = por %p154, %p155
      %p158 = scmp.ne.s32.totalorder %s143, %s157
      %p159 = scmp.eq.s32.totalorder %s28, 0
      %p160 = por %p158, %p159
      %s162 = sadd.s32 %s161, 1
      %p165 = scmp.eq.s32.totalorder %s22, 1
      %p166 = scmp.ne.s32.totalorder %s161, %s163
      %p167 = scmp.eq.s32.totalorder %s22, 0
      %p168 = por %p166, %p167
      %p169 = scmp.ne.s32.totalorder %s161, %s163
      %p170 = scmp.eq.s32.totalorder %s27, 1
      %p171 = por %p169, %p170
      %p172 = scmp.ne.s32.totalorder %s163, %s164
      %p173 = scmp.eq.s32.totalorder %s27, 0
      %p174 = por %p172, %p173
      %p175 = scmp.ne.s32.totalorder %s163, %s164
      %p176 = scmp.eq.s32.totalorder %s28, 1
      %p177 = por %p175, %p176
      %p179 = scmp.ne.s32.totalorder %s164, %s178
      %p180 = scmp.eq.s32.totalorder %s28, 0
      %p181 = por %p179, %p180
      %s183 = sadd.s32 %s182, 1
      %p186 = scmp.eq.s32.totalorder %s22, 1
      %p187 = scmp.ne.s32.totalorder %s182, %s184
      %p188 = scmp.eq.s32.totalorder %s22, 0
      %p189 = por %p187, %p188
      %p190 = scmp.ne.s32.totalorder %s182, %s184
      %p191 = scmp.eq.s32.totalorder %s27, 1
      %p192 = por %p190, %p191
      %p193 = scmp.ne.s32.totalorder %s184, %s185
      %p194 = scmp.eq.s32.totalorder %s27, 0
      %p195 = por %p193, %p194
      %p196 = scmp.ne.s32.totalorder %s184, %s185
      %p197 = scmp.eq.s32.totalorder %s28, 1
      %p198 = por %p196, %p197
      %p200 = scmp.ne.s32.totalorder %s185, %s199
      %p201 = scmp.eq.s32.totalorder %s28, 0
      %p202 = por %p200, %p201
      %s204 = sadd.s32 %s203, 1
      %p207 = scmp.eq.s32.totalorder %s22, 1
      %p208 = scmp.ne.s32.totalorder %s203, %s205
      %p209 = scmp.eq.s32.totalorder %s22, 0
      %p210 = por %p208, %p209
      %p211 = scmp.ne.s32.totalorder %s203, %s205
      %p212 = scmp.eq.s32.totalorder %s27, 1
      %p213 = por %p211, %p212
      %p214 = scmp.ne.s32.totalorder %s205, %s206
      %p215 = scmp.eq.s32.totalorder %s27, 0
      %p216 = por %p214, %p215
      %p217 = scmp.ne.s32.totalorder %s205, %s206
      %p218 = scmp.eq.s32.totalorder %s28, 1
      %p219 = por %p217, %p218
      %p221 = scmp.ne.s32.totalorder %s206, %s220
      %p222 = scmp.eq.s32.totalorder %s28, 0
      %p223 = por %p221, %p222
      %s225 = sadd.s32 %s224, 1
      %p228 = scmp.eq.s32.totalorder %s22, 1
      %p229 = scmp.ne.s32.totalorder %s224, %s226
      %p230 = scmp.eq.s32.totalorder %s22, 0
      %p231 = por %p229, %p230
      %p232 = scmp.ne.s32.totalorder %s224, %s226
      %p233 = scmp.eq.s32.totalorder %s27, 1
      %p234 = por %p232, %p233
      %p235 = scmp.ne.s32.totalorder %s226, %s227
      %p236 = scmp.eq.s32.totalorder %s27, 0
      %p237 = por %p235, %p236
      %p238 = scmp.ne.s32.totalorder %s226, %s227
      %p239 = scmp.eq.s32.totalorder %s28, 1
      %p240 = por %p238, %p239
      %p242 = scmp.ne.s32.totalorder %s227, %s241
      %p243 = scmp.eq.s32.totalorder %s28, 0
      %p244 = por %p242, %p243
      %s245 = ssub.s32 %s22, %s29
      %p246 = scmp.eq.s32.totalorder %s245, 0
      %s248 = sadd.s32 %s247, 1
      %s249 = scalar_select %p246, %s247, %s248
      %p252 = pneg %p246
      %p253 = scmp.eq.s32.totalorder %s22, 1
      %p254 = por %p252, %p253
      %p255 = scmp.ne.s32.totalorder %s247, %s250
      %p256 = scmp.eq.s32.totalorder %s22, 0
      %p257 = por %p255, %p256
      %p258 = scmp.ne.s32.totalorder %s247, %s250
      %p259 = scmp.eq.s32.totalorder %s27, 1
      %p260 = por %p258, %p259
      %p261 = scmp.ne.s32.totalorder %s250, %s251
      %p262 = scmp.eq.s32.totalorder %s27, 0
      %p263 = por %p261, %p262
      %p264 = scmp.ne.s32.totalorder %s250, %s251
      %p265 = scmp.eq.s32.totalorder %s28, 1
      %p266 = por %p264, %p265
      %p268 = scmp.ne.s32.totalorder %s251, %s267
      %p269 = scmp.eq.s32.totalorder %s28, 0
      %p270 = por %p268, %p269
      %p271 = scmp.le.s32.totalorder 1, %s22
      %p272 = scmp.lt.s32.totalorder %s22, 3
      %p273 = pnand %p271, %p272
      %p274 = pneg %p273
      // Predicated region
      $region9: #{tpu_custom_call.1} parent=5 // pred_check
        _
      $region10: #{tpu_custom_call.1} parent=5 // pred_check_branch
        %276 = sbr.rel (%p273) target = $region12
      $region11: #{tpu_custom_call.1} parent=5 // pred_region
        %s277 = ssub.s32 %s22, 1
        // Predicated region
        $region13: #{tpu_custom_call.1} parent=11 // pred_check
          %p278 = pneg %p69
        $region14: #{tpu_custom_call.1} parent=11 // pred_check_branch
          %280 = sbr.rel (%p278) target = $region16
        $region15: #{tpu_custom_call.1} parent=11 // pred_region
          %282 = vsyncadd [#allocation5], 0
          %s283 = sshll.u32 %s1, 4
          %s284 = int_to_ptr.hbm [resolvable:$true] %s283
          %s285 = sshll.u32 [#allocation4], 4
          %s286 = int_to_ptr.vmem [resolvable:$true] %s285
          %291 = dma.hbm_to_vmem [thread:$0]  %s284, 768, %s286, [#allocation5], 128, 128, 8
        $region16: #{tpu_custom_call.1} parent=11 // pred_fallthru
          _
        // Predicated region
        $region17: #{tpu_custom_call.1} parent=11 // pred_check
          %p292 = pneg %p90
        $region18: #{tpu_custom_call.1} parent=11 // pred_check_branch
          %294 = sbr.rel (%p292) target = $region20
        $region19: #{tpu_custom_call.1} parent=11 // pred_region
          %296 = vsyncadd [#allocation5], 0
          %s298 = sshll.u32 %s2, 4
          %s299 = int_to_ptr.hbm [resolvable:$true] %s298
          %s300 = sshll.u32 [#allocation6], 4
          %s301 = int_to_ptr.vmem [resolvable:$true] %s300
          %303 = dma.hbm_to_vmem [thread:$0]  %s299, 32, %s301, [#allocation5]
        $region20: #{tpu_custom_call.1} parent=11 // pred_fallthru
          _
        // Predicated region
        $region21: #{tpu_custom_call.1} parent=11 // pred_check
          %p304 = pneg %p111
        $region22: #{tpu_custom_call.1} parent=11 // pred_check_branch
          %306 = sbr.rel (%p304) target = $region24
        $region23: #{tpu_custom_call.1} parent=11 // pred_region
          _
        $region24: #{tpu_custom_call.1} parent=11 // pred_fallthru
          _
        // Predicated region
        $region25: #{tpu_custom_call.1} parent=11 // pred_check
          %p307 = pneg %p132
        $region26: #{tpu_custom_call.1} parent=11 // pred_check_branch
          %309 = sbr.rel (%p307) target = $region28
        $region27: #{tpu_custom_call.1} parent=11 // pred_region
          %311 = vsyncadd [#allocation8], 0
          %s312 = sshll.u32 %s4, 4
          %s313 = int_to_ptr.hbm [resolvable:$true] %s312
          %s314 = sshll.u32 [#allocation7], 4
          %s315 = int_to_ptr.vmem [resolvable:$true] %s314
          %320 = dma.hbm_to_vmem [thread:$0]  %s313, 12288, %s315, [#allocation8], 128, 128, 8
        $region28: #{tpu_custom_call.1} parent=11 // pred_fallthru
          _
        // Predicated region
        $region29: #{tpu_custom_call.1} parent=11 // pred_check
          %p321 = pneg %p153
        $region30: #{tpu_custom_call.1} parent=11 // pred_check_branch
          %323 = sbr.rel (%p321) target = $region32
        $region31: #{tpu_custom_call.1} parent=11 // pred_region
          _
        $region32: #{tpu_custom_call.1} parent=11 // pred_fallthru
          _
        // Predicated region
        $region33: #{tpu_custom_call.1} parent=11 // pred_check
          %p324 = pneg %p174
        $region34: #{tpu_custom_call.1} parent=11 // pred_check_branch
          %326 = sbr.rel (%p324) target = $region36
        $region35: #{tpu_custom_call.1} parent=11 // pred_region
          %328 = vsyncadd [#allocation8], 0
          %s330 = sshll.u32 %s6, 4
          %s331 = int_to_ptr.hbm [resolvable:$true] %s330
          %s332 = sshll.u32 [#allocation9], 4
          %s333 = int_to_ptr.vmem [resolvable:$true] %s332
          %335 = dma.hbm_to_vmem [thread:$0]  %s331, 32, %s333, [#allocation8]
        $region36: #{tpu_custom_call.1} parent=11 // pred_fallthru
          _
        // Predicated region
        $region37: #{tpu_custom_call.1} parent=11 // pred_check
          %p336 = pneg %p195
        $region38: #{tpu_custom_call.1} parent=11 // pred_check_branch
          %338 = sbr.rel (%p336) target = $region40
        $region39: #{tpu_custom_call.1} parent=11 // pred_region
          %340 = vsyncadd [#allocation11], 0
          %s341 = sshll.u32 %s7, 4
          %s342 = int_to_ptr.hbm [resolvable:$true] %s341
          %s343 = sshll.u32 [#allocation10], 4
          %s344 = int_to_ptr.vmem [resolvable:$true] %s343
          %349 = dma.hbm_to_vmem [thread:$0]  %s342, 4096, %s344, [#allocation11], 128, 128, 8
        $region40: #{tpu_custom_call.1} parent=11 // pred_fallthru
          _
        // Predicated region
        $region41: #{tpu_custom_call.1} parent=11 // pred_check
          %p350 = pneg %p216
        $region42: #{tpu_custom_call.1} parent=11 // pred_check_branch
          %352 = sbr.rel (%p350) target = $region44
        $region43: #{tpu_custom_call.1} parent=11 // pred_region
          _
        $region44: #{tpu_custom_call.1} parent=11 // pred_fallthru
          _
        // Predicated region
        $region45: #{tpu_custom_call.1} parent=11 // pred_check
          %p353 = pneg %p237
        $region46: #{tpu_custom_call.1} parent=11 // pred_check_branch
          %355 = sbr.rel (%p353) target = $region48
        $region47: #{tpu_custom_call.1} parent=11 // pred_region
          _
        $region48: #{tpu_custom_call.1} parent=11 // pred_fallthru
          _
      $region12: #{tpu_custom_call.1} parent=5 // pred_fallthru
        _
      %p356 = scmp.lt.s32.totalorder %s22, 2
      // Predicated region
      $region49: #{tpu_custom_call.1} parent=5 // pred_check
        %p357 = pneg %p356
      $region50: #{tpu_custom_call.1} parent=5 // pred_check_branch
        %359 = sbr.rel (%p357) target = $region52
      $region51: #{tpu_custom_call.1} parent=5 // pred_region
        // Predicated region
        $region53: #{tpu_custom_call.1} parent=51 // pred_check
          %p360 = pneg %p42
        $region54: #{tpu_custom_call.1} parent=51 // pred_check_branch
          %362 = sbr.rel (%p360) target = $region56
        $region55: #{tpu_custom_call.1} parent=51 // pred_region
          %s363 = sand.u32 %s32, 1
          %s364 = scalar_lea.sflag [#allocation3], %s363
          %s365 = sand.u32 %s32, 1
          %s366 = smul.addr %s365, 16
          %s367 = scalar_lea.vmem [#allocation2], %s366
          %369 = vsyncadd %s364, 0
          %s370 = smul.addr %s22, 2
          %s371 = smul.addr %s370, 8
          %s372 = scalar_lea.hbm %s0, %s371
          %s373 = sshll.u32 %s372, 4
          %s374 = int_to_ptr.hbm [resolvable:$true] %s373
          %s375 = sshll.u32 %s367, 4
          %s376 = int_to_ptr.vmem [resolvable:$true] %s375
          %381 = dma.hbm_to_vmem [thread:$0]  %s374, 256, %s376, %s364, 128, 128, 8
        $region56: #{tpu_custom_call.1} parent=51 // pred_fallthru
          _
      $region52: #{tpu_custom_call.1} parent=5 // pred_fallthru
        _
      %p382 = scmp.le.s32.totalorder 1, %s22
      %p383 = scmp.lt.s32.totalorder %s22, 3
      %p384 = pnand %p382, %p383
      %p385 = pneg %p384
      // Predicated region
      $region57: #{tpu_custom_call.1} parent=5 // pred_check
        _
      $region58: #{tpu_custom_call.1} parent=5 // pred_check_branch
        %387 = sbr.rel (%p384) target = $region60
      $region59: #{tpu_custom_call.1} parent=5 // pred_region
        %s388 = ssub.s32 %s22, 1
        %s389 = sand.u32 %s35, 1
        %s390 = scalar_lea.sflag [#allocation3], %s389
        %s391 = sand.u32 %s35, 1
        %s392 = smul.addr %s391, 16
        %s393 = scalar_lea.vmem [#allocation2], %s392
        // Predicated region
        $region61: #{tpu_custom_call.1} parent=59 // pred_check
          %p394 = pneg %p48
        $region62: #{tpu_custom_call.1} parent=59 // pred_check_branch
          %396 = sbr.rel (%p394) target = $region64
        $region63: #{tpu_custom_call.1} parent=59 // pred_region
          %398 = dma.done %s390, 256
        $region64: #{tpu_custom_call.1} parent=59 // pred_fallthru
          _
        // Predicated region
        $region65: #{tpu_custom_call.1} parent=59 // pred_check
          %p399 = pneg %p69
        $region66: #{tpu_custom_call.1} parent=59 // pred_check_branch
          %401 = sbr.rel (%p399) target = $region68
        $region67: #{tpu_custom_call.1} parent=59 // pred_region
          %403 = dma.done [#allocation5], 768
        $region68: #{tpu_custom_call.1} parent=59 // pred_fallthru
          _
        // Predicated region
        $region69: #{tpu_custom_call.1} parent=59 // pred_check
          %p404 = pneg %p90
        $region70: #{tpu_custom_call.1} parent=59 // pred_check_branch
          %406 = sbr.rel (%p404) target = $region72
        $region71: #{tpu_custom_call.1} parent=59 // pred_region
          %408 = dma.done [#allocation5], 32
        $region72: #{tpu_custom_call.1} parent=59 // pred_fallthru
          _
        // Predicated region
        $region73: #{tpu_custom_call.1} parent=59 // pred_check
          %p409 = pneg %p132
        $region74: #{tpu_custom_call.1} parent=59 // pred_check_branch
          %411 = sbr.rel (%p409) target = $region76
        $region75: #{tpu_custom_call.1} parent=59 // pred_region
          %413 = dma.done [#allocation8], 12288
        $region76: #{tpu_custom_call.1} parent=59 // pred_fallthru
          _
        // Predicated region
        $region77: #{tpu_custom_call.1} parent=59 // pred_check
          %p414 = pneg %p174
        $region78: #{tpu_custom_call.1} parent=59 // pred_check_branch
          %416 = sbr.rel (%p414) target = $region80
        $region79: #{tpu_custom_call.1} parent=59 // pred_region
          %418 = dma.done [#allocation8], 32
        $region80: #{tpu_custom_call.1} parent=59 // pred_fallthru
          _
        // Predicated region
        $region81: #{tpu_custom_call.1} parent=59 // pred_check
          %p419 = pneg %p195
        $region82: #{tpu_custom_call.1} parent=59 // pred_check_branch
          %421 = sbr.rel (%p419) target = $region84
        $region83: #{tpu_custom_call.1} parent=59 // pred_region
          %423 = dma.done [#allocation11], 4096
        $region84: #{tpu_custom_call.1} parent=59 // pred_fallthru
          _
        %s424 = sand.u32 %s35, 1
        %s425 = scalar_lea.sflag [#allocation3], %s424
        %s426 = sand.u32 %s35, 1
        %s427 = smul.addr %s426, 16
        %s428 = scalar_lea.vmem [#allocation2], %s427
        %p429 = pneg %p48
        %p430 = pneg %p45
        %p431 = pneg %p69
        %p432 = pneg %p66
        %p433 = pneg %p90
        %p434 = pneg %p87
        %p435 = pneg %p111
        %p436 = pneg %p108
        %p437 = pneg %p132
        %p438 = pneg %p129
        %p439 = pneg %p153
        %p440 = pneg %p150
        %p441 = pneg %p174
        %p442 = pneg %p171
        %p443 = pneg %p195
        %p444 = pneg %p192
        %p445 = pneg %p216
        %p446 = pneg %p213
        %p447 = pneg %p237
        %p448 = pneg %p234
        %p449 = pneg %p263
        %p450 = pneg %p260
        %p451 = scmp.lt.s32.totalorder %s27, 1
        %s452 = scalar_select %p451, %s27, 1
        %s453 = smul.addr %s452, 4
        %s454 = smul.addr %s453, 8
        %s455 = scalar_lea.vmem %s10, %s454
        %p456 = scmp.lt.s32.totalorder %s27, 1
        %s457 = scalar_select %p456, %s27, 1
        %s458 = smul.addr %s457, 4
        %s459 = smul.addr %s458, 8
        %s460 = scalar_lea.vmem %s10, %s459
        %v462 = vld [vmem:[%s393] sm:$0xff]
        %v463 = vld [vmem:[%s393 + $0x8] sm:$0xff]
        %v464 = vpack.c.bf16 %v462, %v462
        %v465 = vpack.c.bf16 %v463, %v463
        %v466 = vld [vmem:[#allocation4] sm:$0xff]
        %v467 = vld [vmem:[#allocation4 + $0x8] sm:$0xff]
        %v468 = vld [vmem:[#allocation4 + $0x10] sm:$0xff]
        %v469 = vld [vmem:[#allocation4 + $0x18] sm:$0xff]
        %v472 = vunpack.c.l.b16 %v464
        %v473 = vunpack.c.l.b16 %v465
        %v474 = vpack.c.b16 %v473, %v472
        %v476 = vshrl.u32 %v474, 16
        %v478 = vshll.u32 %v474, 16
        %v480 = vrot.slane %v478, 1
        %v481 = vor.u32 %v476, %v480
        %v484 = vunpack.c.l.b16 %v468
        %v485 = vunpack.c.h.b16 %v468
        %v486 = vunpack.c.l.b16 %v469
        %v487 = vunpack.c.h.b16 %v469
        %v488 = vpack.c.b16 %v486, %v484
        %v489 = vpack.c.b16 %v487, %v485
        %vm492 = vcmask 130048
        %v494 = vsel %vm492, %v481, 0
        %496 = vmatpush.bf16.msra.mxu0 0
        %497 = vmatpush.bf16.msra.mxu0 0
        %498 = vmatpush.bf16.msra.mxu0 0
        %499 = vmatpush.bf16.msra.mxu0 0
        %500 = vmatpush.bf16.msra.mxu0 0
        %501 = vmatpush.bf16.msra.mxu0 0
        %502 = vmatpush.bf16.msra.mxu0 0
        %503 = vmatpush.bf16.msra.mxu0 %v488
        %504 = vmatmul.bf16.gmra.mxu0 %v494
        %v505 = vpop.f32.mrf.mxu0
        %v506 = vadd.f32 0.0, %v505
        %v507 = vpop.f32.mrf.mxu0
        %v508 = vadd.f32 0.0, %v507
        %509 = vdwg.mxu0
        %510 = vmatpush.bf16.msra.mxu0 0
        %511 = vmatpush.bf16.msra.mxu0 0
        %512 = vmatpush.bf16.msra.mxu0 0
        %513 = vmatpush.bf16.msra.mxu0 0
        %514 = vmatpush.bf16.msra.mxu0 0
        %515 = vmatpush.bf16.msra.mxu0 0
        %516 = vmatpush.bf16.msra.mxu0 0
        %517 = vmatpush.bf16.msra.mxu0 %v489
        %518 = vmatmul.bf16.gmra.mxu0 %v494
        %v519 = vpop.f32.mrf.mxu0
        %v520 = vadd.f32 0.0, %v519
        %v521 = vpop.f32.mrf.mxu0
        %v522 = vadd.f32 0.0, %v521
        %523 = vdwg.mxu0
        %v526 = vunpack.c.l.b16 %v466
        %v527 = vunpack.c.h.b16 %v466
        %v528 = vunpack.c.l.b16 %v467
        %v529 = vunpack.c.h.b16 %v467
        %v530 = vpack.c.b16 %v528, %v526
        %v531 = vpack.c.b16 %v529, %v527
        %v534 = vsel %vm492, %v474, 0
        %536 = vmatpush.bf16.msra.mxu0 0
        %537 = vmatpush.bf16.msra.mxu0 0
        %538 = vmatpush.bf16.msra.mxu0 0
        %539 = vmatpush.bf16.msra.mxu0 0
        %540 = vmatpush.bf16.msra.mxu0 0
        %541 = vmatpush.bf16.msra.mxu0 0
        %542 = vmatpush.bf16.msra.mxu0 0
        %543 = vmatpush.bf16.msra.mxu0 %v530
        %544 = vmatmul.bf16.gmra.mxu0 %v534
        %v545 = vpop.f32.mrf.mxu0
        %v546 = vadd.f32 %v506, %v545
        %v547 = vpop.f32.mrf.mxu0
        %v548 = vadd.f32 %v508, %v547
        %549 = vdwg.mxu0
        %550 = vmatpush.bf16.msra.mxu0 0
        %551 = vmatpush.bf16.msra.mxu0 0
        %552 = vmatpush.bf16.msra.mxu0 0
        %553 = vmatpush.bf16.msra.mxu0 0
        %554 = vmatpush.bf16.msra.mxu0 0
        %555 = vmatpush.bf16.msra.mxu0 0
        %556 = vmatpush.bf16.msra.mxu0 0
        %557 = vmatpush.bf16.msra.mxu0 %v531
        %558 = vmatmul.bf16.gmra.mxu0 %v534
        %v559 = vpop.f32.mrf.mxu0
        %v560 = vadd.f32 %v520, %v559
        %v561 = vpop.f32.mrf.mxu0
        %v562 = vadd.f32 %v522, %v561
        %563 = vdwg.mxu0
        %v564 = vld [vmem:[#allocation4 + $0x20] sm:$0xff]
        %v565 = vld [vmem:[#allocation4 + $0x28] sm:$0xff]
        %v566 = vrot.slane %v474, 1
        %v569 = vunpack.c.l.b16 %v564
        %v570 = vunpack.c.h.b16 %v564
        %v571 = vunpack.c.l.b16 %v565
        %v572 = vunpack.c.h.b16 %v565
        %v573 = vpack.c.b16 %v571, %v569
        %v574 = vpack.c.b16 %v572, %v570
        %v578 = vsel %vm492, %v566, 0
        %580 = vmatpush.bf16.msra.mxu0 0
        %581 = vmatpush.bf16.msra.mxu0 0
        %582 = vmatpush.bf16.msra.mxu0 0
        %583 = vmatpush.bf16.msra.mxu0 0
        %584 = vmatpush.bf16.msra.mxu0 0
        %585 = vmatpush.bf16.msra.mxu0 0
        %586 = vmatpush.bf16.msra.mxu0 0
        %587 = vmatpush.bf16.msra.mxu0 %v573
        %588 = vmatmul.bf16.gmra.mxu0 %v578
        %v589 = vpop.f32.mrf.mxu0
        %v590 = vadd.f32 0.0, %v589
        %v591 = vpop.f32.mrf.mxu0
        %v592 = vadd.f32 0.0, %v591
        %593 = vdwg.mxu0
        %594 = vmatpush.bf16.msra.mxu0 0
        %595 = vmatpush.bf16.msra.mxu0 0
        %596 = vmatpush.bf16.msra.mxu0 0
        %597 = vmatpush.bf16.msra.mxu0 0
        %598 = vmatpush.bf16.msra.mxu0 0
        %599 = vmatpush.bf16.msra.mxu0 0
        %600 = vmatpush.bf16.msra.mxu0 0
        %601 = vmatpush.bf16.msra.mxu0 %v574
        %602 = vmatmul.bf16.gmra.mxu0 %v578
        %v603 = vpop.f32.mrf.mxu0
        %v604 = vadd.f32 0.0, %v603
        %v605 = vpop.f32.mrf.mxu0
        %v606 = vadd.f32 0.0, %v605
        %607 = vdwg.mxu0
        %v608 = vadd.f32 %v546, %v590
        %v609 = vadd.f32 %v560, %v604
        %v610 = vadd.f32 %v548, %v592
        %v611 = vadd.f32 %v562, %v606
        %v612 = vld [vmem:[#allocation6] sm:$0x3]
        %v614 = vperm.slane %v612, 0
        %v615 = vperm.slane %v612, 1
        %v618 = vmul.f32 %v608, %v614
        %v619 = vmul.f32 %v609, %v615
        %v620 = vmul.f32 %v610, %v614
        %v621 = vmul.f32 %v611, %v615
        %v622 = vld [vmem:[%s3] sm:$0x3]
        %v624 = vperm.slane %v622, 0
        %v625 = vperm.slane %v622, 1
        %v628 = vadd.f32 %v618, %v624
        %v629 = vadd.f32 %v619, %v625
        %v630 = vadd.f32 %v620, %v624
        %v631 = vadd.f32 %v621, %v625
        %v632 = vmax.f32 %v628, 0.0
        %v633 = vmax.f32 %v629, 0.0
        %v634 = vmax.f32 %v630, 0.0
        %v635 = vmax.f32 %v631, 0.0
        %v636 = vpack.c.bf16 %v633, %v632
        %v637 = vpack.c.bf16 %v635, %v634
        %v638 = vld [vmem:[#allocation7] sm:$0xff]
        %v639 = vld [vmem:[#allocation7 + $0x8] sm:$0xff]
        %v640 = vld [vmem:[#allocation7 + $0x10] sm:$0xff]
        %v641 = vld [vmem:[#allocation7 + $0x18] sm:$0xff]
        %v642 = vld [vmem:[#allocation7 + $0x20] sm:$0xff]
        %v643 = vld [vmem:[#allocation7 + $0x28] sm:$0xff]
        %v644 = vld [vmem:[#allocation7 + $0x30] sm:$0xff]
        %v645 = vld [vmem:[#allocation7 + $0x38] sm:$0xff]
        %v646 = vld [vmem:[#allocation7 + $0x40] sm:$0xff]
        %v647 = vld [vmem:[#allocation7 + $0x48] sm:$0xff]
        %v648 = vld [vmem:[#allocation7 + $0x50] sm:$0xff]
        %v649 = vld [vmem:[#allocation7 + $0x58] sm:$0xff]
        %v650 = vld [vmem:[#allocation7 + $0x60] sm:$0xff]
        %v651 = vld [vmem:[#allocation7 + $0x68] sm:$0xff]
        %v652 = vld [vmem:[#allocation7 + $0x70] sm:$0xff]
        %v653 = vld [vmem:[#allocation7 + $0x78] sm:$0xff]
        %v654 = vld [vmem:[#allocation7 + $0x80] sm:$0xff]
        %v655 = vld [vmem:[#allocation7 + $0x88] sm:$0xff]
        %v656 = vld [vmem:[#allocation7 + $0x90] sm:$0xff]
        %v657 = vld [vmem:[#allocation7 + $0x98] sm:$0xff]
        %v658 = vld [vmem:[#allocation7 + $0xa0] sm:$0xff]
        %v659 = vld [vmem:[#allocation7 + $0xa8] sm:$0xff]
        %v660 = vld [vmem:[#allocation7 + $0xb0] sm:$0xff]
        %v661 = vld [vmem:[#allocation7 + $0xb8] sm:$0xff]
        %v662 = vld [vmem:[#allocation7 + $0xc0] sm:$0xff]
        %v663 = vld [vmem:[#allocation7 + $0xc8] sm:$0xff]
        %v664 = vld [vmem:[#allocation7 + $0xd0] sm:$0xff]
        %v665 = vld [vmem:[#allocation7 + $0xd8] sm:$0xff]
        %v666 = vld [vmem:[#allocation7 + $0xe0] sm:$0xff]
        %v667 = vld [vmem:[#allocation7 + $0xe8] sm:$0xff]
        %v668 = vld [vmem:[#allocation7 + $0xf0] sm:$0xff]
        %v669 = vld [vmem:[#allocation7 + $0xf8] sm:$0xff]
        %v670 = vld [vmem:[#allocation7 + $0x100] sm:$0xff]
        %v671 = vld [vmem:[#allocation7 + $0x108] sm:$0xff]
        %v672 = vld [vmem:[#allocation7 + $0x110] sm:$0xff]
        %v673 = vld [vmem:[#allocation7 + $0x118] sm:$0xff]
        %v674 = vld [vmem:[#allocation7 + $0x120] sm:$0xff]
        %v675 = vld [vmem:[#allocation7 + $0x128] sm:$0xff]
        %v676 = vld [vmem:[#allocation7 + $0x130] sm:$0xff]
        %v677 = vld [vmem:[#allocation7 + $0x138] sm:$0xff]
        %v678 = vld [vmem:[#allocation7 + $0x140] sm:$0xff]
        %v679 = vld [vmem:[#allocation7 + $0x148] sm:$0xff]
        %v680 = vld [vmem:[#allocation7 + $0x150] sm:$0xff]
        %v681 = vld [vmem:[#allocation7 + $0x158] sm:$0xff]
        %v682 = vld [vmem:[#allocation7 + $0x160] sm:$0xff]
        %v683 = vld [vmem:[#allocation7 + $0x168] sm:$0xff]
        %v684 = vld [vmem:[#allocation7 + $0x170] sm:$0xff]
        %v685 = vld [vmem:[#allocation7 + $0x178] sm:$0xff]
        %v686 = vld [vmem:[#allocation7 + $0x180] sm:$0xff]
        %v687 = vld [vmem:[#allocation7 + $0x188] sm:$0xff]
        %v688 = vld [vmem:[#allocation7 + $0x190] sm:$0xff]
        %v689 = vld [vmem:[#allocation7 + $0x198] sm:$0xff]
        %v690 = vld [vmem:[#allocation7 + $0x1a0] sm:$0xff]
        %v691 = vld [vmem:[#allocation7 + $0x1a8] sm:$0xff]
        %v692 = vld [vmem:[#allocation7 + $0x1b0] sm:$0xff]
        %v693 = vld [vmem:[#allocation7 + $0x1b8] sm:$0xff]
        %v694 = vld [vmem:[#allocation7 + $0x1c0] sm:$0xff]
        %v695 = vld [vmem:[#allocation7 + $0x1c8] sm:$0xff]
        %v696 = vld [vmem:[#allocation7 + $0x1d0] sm:$0xff]
        %v697 = vld [vmem:[#allocation7 + $0x1d8] sm:$0xff]
        %v698 = vld [vmem:[#allocation7 + $0x1e0] sm:$0xff]
        %v699 = vld [vmem:[#allocation7 + $0x1e8] sm:$0xff]
        %v700 = vld [vmem:[#allocation7 + $0x1f0] sm:$0xff]
        %v701 = vld [vmem:[#allocation7 + $0x1f8] sm:$0xff]
        %v704 = vunpack.c.l.b16 %v636
        %v705 = vunpack.c.h.b16 %v636
        %v706 = vunpack.c.l.b16 %v637
        %v707 = vunpack.c.h.b16 %v637
        %v708 = vpack.c.b16 %v706, %v704
        %v709 = vpack.c.b16 %v707, %v705
        %v711 = vshrl.u32 %v708, 16
        %v713 = vshll.u32 %v708, 16
        %v715 = vrot.slane %v713, 1
        %v716 = vor.u32 %v711, %v715
        %v718 = vshrl.u32 %v709, 16
        %v720 = vshll.u32 %v709, 16
        %v722 = vrot.slane %v720, 1
        %v723 = vor.u32 %v718, %v722
        %v758 = vunpack.c.l.b16 %v670
        %v759 = vunpack.c.h.b16 %v670
        %v760 = vunpack.c.l.b16 %v671
        %v761 = vunpack.c.h.b16 %v671
        %v762 = vunpack.c.l.b16 %v672
        %v763 = vunpack.c.h.b16 %v672
        %v764 = vunpack.c.l.b16 %v673
        %v765 = vunpack.c.h.b16 %v673
        %v766 = vunpack.c.l.b16 %v674
        %v767 = vunpack.c.h.b16 %v674
        %v768 = vunpack.c.l.b16 %v675
        %v769 = vunpack.c.h.b16 %v675
        %v770 = vunpack.c.l.b16 %v676
        %v771 = vunpack.c.h.b16 %v676
        %v772 = vunpack.c.l.b16 %v677
        %v773 = vunpack.c.h.b16 %v677
        %v774 = vunpack.c.l.b16 %v678
        %v775 = vunpack.c.h.b16 %v678
        %v776 = vunpack.c.l.b16 %v679
        %v777 = vunpack.c.h.b16 %v679
        %v778 = vunpack.c.l.b16 %v680
        %v779 = vunpack.c.h.b16 %v680
        %v780 = vunpack.c.l.b16 %v681
        %v781 = vunpack.c.h.b16 %v681
        %v782 = vunpack.c.l.b16 %v682
        %v783 = vunpack.c.h.b16 %v682
        %v784 = vunpack.c.l.b16 %v683
        %v785 = vunpack.c.h.b16 %v683
        %v786 = vunpack.c.l.b16 %v684
        %v787 = vunpack.c.h.b16 %v684
        %v788 = vunpack.c.l.b16 %v685
        %v789 = vunpack.c.h.b16 %v685
        %v790 = vunpack.c.l.b16 %v686
        %v791 = vunpack.c.h.b16 %v686
        %v792 = vunpack.c.l.b16 %v687
        %v793 = vunpack.c.h.b16 %v687
        %v794 = vunpack.c.l.b16 %v688
        %v795 = vunpack.c.h.b16 %v688
        %v796 = vunpack.c.l.b16 %v689
        %v797 = vunpack.c.h.b16 %v689
        %v798 = vunpack.c.l.b16 %v690
        %v799 = vunpack.c.h.b16 %v690
        %v800 = vunpack.c.l.b16 %v691
        %v801 = vunpack.c.h.b16 %v691
        %v802 = vunpack.c.l.b16 %v692
        %v803 = vunpack.c.h.b16 %v692
        %v804 = vunpack.c.l.b16 %v693
        %v805 = vunpack.c.h.b16 %v693
        %v806 = vunpack.c.l.b16 %v694
        %v807 = vunpack.c.h.b16 %v694
        %v808 = vunpack.c.l.b16 %v695
        %v809 = vunpack.c.h.b16 %v695
        %v810 = vunpack.c.l.b16 %v696
        %v811 = vunpack.c.h.b16 %v696
        %v812 = vunpack.c.l.b16 %v697
        %v813 = vunpack.c.h.b16 %v697
        %v814 = vunpack.c.l.b16 %v698
        %v815 = vunpack.c.h.b16 %v698
        %v816 = vunpack.c.l.b16 %v699
        %v817 = vunpack.c.h.b16 %v699
        %v818 = vunpack.c.l.b16 %v700
        %v819 = vunpack.c.h.b16 %v700
        %v820 = vunpack.c.l.b16 %v701
        %v821 = vunpack.c.h.b16 %v701
        %v822 = vpack.c.b16 %v760, %v758
        %v823 = vpack.c.b16 %v761, %v759
        %v824 = vpack.c.b16 %v764, %v762
        %v825 = vpack.c.b16 %v765, %v763
        %v826 = vpack.c.b16 %v768, %v766
        %v827 = vpack.c.b16 %v769, %v767
        %v828 = vpack.c.b16 %v772, %v770
        %v829 = vpack.c.b16 %v773, %v771
        %v830 = vpack.c.b16 %v776, %v774
        %v831 = vpack.c.b16 %v777, %v775
        %v832 = vpack.c.b16 %v780, %v778
        %v833 = vpack.c.b16 %v781, %v779
        %v834 = vpack.c.b16 %v784, %v782
        %v835 = vpack.c.b16 %v785, %v783
        %v836 = vpack.c.b16 %v788, %v786
        %v837 = vpack.c.b16 %v789, %v787
        %v838 = vpack.c.b16 %v792, %v790
        %v839 = vpack.c.b16 %v793, %v791
        %v840 = vpack.c.b16 %v796, %v794
        %v841 = vpack.c.b16 %v797, %v795
        %v842 = vpack.c.b16 %v800, %v798
        %v843 = vpack.c.b16 %v801, %v799
        %v844 = vpack.c.b16 %v804, %v802
        %v845 = vpack.c.b16 %v805, %v803
        %v846 = vpack.c.b16 %v808, %v806
        %v847 = vpack.c.b16 %v809, %v807
        %v848 = vpack.c.b16 %v812, %v810
        %v849 = vpack.c.b16 %v813, %v811
        %v850 = vpack.c.b16 %v816, %v814
        %v851 = vpack.c.b16 %v817, %v815
        %v852 = vpack.c.b16 %v820, %v818
        %v853 = vpack.c.b16 %v821, %v819
        %886 = vmatpush.bf16.msra.mxu0 %v836
        %887 = vmatpush.bf16.msra.mxu0 %v834
        %888 = vmatpush.bf16.msra.mxu0 %v832
        %889 = vmatpush.bf16.msra.mxu0 %v830
        %890 = vmatpush.bf16.msra.mxu0 %v828
        %891 = vmatpush.bf16.msra.mxu0 %v826
        %892 = vmatpush.bf16.msra.mxu0 %v824
        %893 = vmatpush.bf16.msra.mxu0 %v822
        %894 = vmatmul.bf16.gmra.mxu0 %v716
        %v895 = vpop.f32.mrf.mxu0
        %v896 = vadd.f32 0.0, %v895
        %v897 = vpop.f32.mrf.mxu0
        %v898 = vadd.f32 0.0, %v897
        %899 = vdwg.mxu0
        %900 = vmatpush.bf16.msra.mxu0 %v852
        %901 = vmatpush.bf16.msra.mxu0 %v850
        %902 = vmatpush.bf16.msra.mxu0 %v848
        %903 = vmatpush.bf16.msra.mxu0 %v846
        %904 = vmatpush.bf16.msra.mxu0 %v844
        %905 = vmatpush.bf16.msra.mxu0 %v842
        %906 = vmatpush.bf16.msra.mxu0 %v840
        %907 = vmatpush.bf16.msra.mxu0 %v838
        %908 = vmatmul.bf16.gmra.mxu0 %v723
        %v909 = vpop.f32.mrf.mxu0
        %v910 = vadd.f32 %v896, %v909
        %v911 = vpop.f32.mrf.mxu0
        %v912 = vadd.f32 %v898, %v911
        %913 = vdwg.mxu0
        %914 = vmatpush.bf16.msra.mxu0 %v837
        %915 = vmatpush.bf16.msra.mxu0 %v835
        %916 = vmatpush.bf16.msra.mxu0 %v833
        %917 = vmatpush.bf16.msra.mxu0 %v831
        %918 = vmatpush.bf16.msra.mxu0 %v829
        %919 = vmatpush.bf16.msra.mxu0 %v827
        %920 = vmatpush.bf16.msra.mxu0 %v825
        %921 = vmatpush.bf16.msra.mxu0 %v823
        %922 = vmatmul.bf16.gmra.mxu0 %v716
        %v923 = vpop.f32.mrf.mxu0
        %v924 = vadd.f32 0.0, %v923
        %v925 = vpop.f32.mrf.mxu0
        %v926 = vadd.f32 0.0, %v925
        %927 = vdwg.mxu0
        %928 = vmatpush.bf16.msra.mxu0 %v853
        %929 = vmatpush.bf16.msra.mxu0 %v851
        %930 = vmatpush.bf16.msra.mxu0 %v849
        %931 = vmatpush.bf16.msra.mxu0 %v847
        %932 = vmatpush.bf16.msra.mxu0 %v845
        %933 = vmatpush.bf16.msra.mxu0 %v843
        %934 = vmatpush.bf16.msra.mxu0 %v841
        %935 = vmatpush.bf16.msra.mxu0 %v839
        %936 = vmatmul.bf16.gmra.mxu0 %v723
        %v937 = vpop.f32.mrf.mxu0
        %v938 = vadd.f32 %v924, %v937
        %v939 = vpop.f32.mrf.mxu0
        %v940 = vadd.f32 %v926, %v939
        %941 = vdwg.mxu0
        %v976 = vunpack.c.l.b16 %v638
        %v977 = vunpack.c.h.b16 %v638
        %v978 = vunpack.c.l.b16 %v639
        %v979 = vunpack.c.h.b16 %v639
        %v980 = vunpack.c.l.b16 %v640
        %v981 = vunpack.c.h.b16 %v640
        %v982 = vunpack.c.l.b16 %v641
        %v983 = vunpack.c.h.b16 %v641
        %v984 = vunpack.c.l.b16 %v642
        %v985 = vunpack.c.h.b16 %v642
        %v986 = vunpack.c.l.b16 %v643
        %v987 = vunpack.c.h.b16 %v643
        %v988 = vunpack.c.l.b16 %v644
        %v989 = vunpack.c.h.b16 %v644
        %v990 = vunpack.c.l.b16 %v645
        %v991 = vunpack.c.h.b16 %v645
        %v992 = vunpack.c.l.b16 %v646
        %v993 = vunpack.c.h.b16 %v646
        %v994 = vunpack.c.l.b16 %v647
        %v995 = vunpack.c.h.b16 %v647
        %v996 = vunpack.c.l.b16 %v648
        %v997 = vunpack.c.h.b16 %v648
        %v998 = vunpack.c.l.b16 %v649
        %v999 = vunpack.c.h.b16 %v649
        %v1000 = vunpack.c.l.b16 %v650
        %v1001 = vunpack.c.h.b16 %v650
        %v1002 = vunpack.c.l.b16 %v651
        %v1003 = vunpack.c.h.b16 %v651
        %v1004 = vunpack.c.l.b16 %v652
        %v1005 = vunpack.c.h.b16 %v652
        %v1006 = vunpack.c.l.b16 %v653
        %v1007 = vunpack.c.h.b16 %v653
        %v1008 = vunpack.c.l.b16 %v654
        %v1009 = vunpack.c.h.b16 %v654
        %v1010 = vunpack.c.l.b16 %v655
        %v1011 = vunpack.c.h.b16 %v655
        %v1012 = vunpack.c.l.b16 %v656
        %v1013 = vunpack.c.h.b16 %v656
        %v1014 = vunpack.c.l.b16 %v657
        %v1015 = vunpack.c.h.b16 %v657
        %v1016 = vunpack.c.l.b16 %v658
        %v1017 = vunpack.c.h.b16 %v658
        %v1018 = vunpack.c.l.b16 %v659
        %v1019 = vunpack.c.h.b16 %v659
        %v1020 = vunpack.c.l.b16 %v660
        %v1021 = vunpack.c.h.b16 %v660
        %v1022 = vunpack.c.l.b16 %v661
        %v1023 = vunpack.c.h.b16 %v661
        %v1024 = vunpack.c.l.b16 %v662
        %v1025 = vunpack.c.h.b16 %v662
        %v1026 = vunpack.c.l.b16 %v663
        %v1027 = vunpack.c.h.b16 %v663
        %v1028 = vunpack.c.l.b16 %v664
        %v1029 = vunpack.c.h.b16 %v664
        %v1030 = vunpack.c.l.b16 %v665
        %v1031 = vunpack.c.h.b16 %v665
        %v1032 = vunpack.c.l.b16 %v666
        %v1033 = vunpack.c.h.b16 %v666
        %v1034 = vunpack.c.l.b16 %v667
        %v1035 = vunpack.c.h.b16 %v667
        %v1036 = vunpack.c.l.b16 %v668
        %v1037 = vunpack.c.h.b16 %v668
        %v1038 = vunpack.c.l.b16 %v669
        %v1039 = vunpack.c.h.b16 %v669
        %v1040 = vpack.c.b16 %v978, %v976
        %v1041 = vpack.c.b16 %v979, %v977
        %v1042 = vpack.c.b16 %v982, %v980
        %v1043 = vpack.c.b16 %v983, %v981
        %v1044 = vpack.c.b16 %v986, %v984
        %v1045 = vpack.c.b16 %v987, %v985
        %v1046 = vpack.c.b16 %v990, %v988
        %v1047 = vpack.c.b16 %v991, %v989
        %v1048 = vpack.c.b16 %v994, %v992
        %v1049 = vpack.c.b16 %v995, %v993
        %v1050 = vpack.c.b16 %v998, %v996
        %v1051 = vpack.c.b16 %v999, %v997
        %v1052 = vpack.c.b16 %v1002, %v1000
        %v1053 = vpack.c.b16 %v1003, %v1001
        %v1054 = vpack.c.b16 %v1006, %v1004
        %v1055 = vpack.c.b16 %v1007, %v1005
        %v1056 = vpack.c.b16 %v1010, %v1008
        %v1057 = vpack.c.b16 %v1011, %v1009
        %v1058 = vpack.c.b16 %v1014, %v1012
        %v1059 = vpack.c.b16 %v1015, %v1013
        %v1060 = vpack.c.b16 %v1018, %v1016
        %v1061 = vpack.c.b16 %v1019, %v1017
        %v1062 = vpack.c.b16 %v1022, %v1020
        %v1063 = vpack.c.b16 %v1023, %v1021
        %v1064 = vpack.c.b16 %v1026, %v1024
        %v1065 = vpack.c.b16 %v1027, %v1025
        %v1066 = vpack.c.b16 %v1030, %v1028
        %v1067 = vpack.c.b16 %v1031, %v1029
        %v1068 = vpack.c.b16 %v1034, %v1032
        %v1069 = vpack.c.b16 %v1035, %v1033
        %v1070 = vpack.c.b16 %v1038, %v1036
        %v1071 = vpack.c.b16 %v1039, %v1037
        %1104 = vmatpush.bf16.msra.mxu0 %v1054
        %1105 = vmatpush.bf16.msra.mxu0 %v1052
        %1106 = vmatpush.bf16.msra.mxu0 %v1050
        %1107 = vmatpush.bf16.msra.mxu0 %v1048
        %1108 = vmatpush.bf16.msra.mxu0 %v1046
        %1109 = vmatpush.bf16.msra.mxu0 %v1044
        %1110 = vmatpush.bf16.msra.mxu0 %v1042
        %1111 = vmatpush.bf16.msra.mxu0 %v1040
        %1112 = vmatmul.bf16.gmra.mxu0 %v708
        %v1113 = vpop.f32.mrf.mxu0
        %v1114 = vadd.f32 %v910, %v1113
        %v1115 = vpop.f32.mrf.mxu0
        %v1116 = vadd.f32 %v912, %v1115
        %1117 = vdwg.mxu0
        %1118 = vmatpush.bf16.msra.mxu0 %v1070
        %1119 = vmatpush.bf16.msra.mxu0 %v1068
        %1120 = vmatpush.bf16.msra.mxu0 %v1066
        %1121 = vmatpush.bf16.msra.mxu0 %v1064
        %1122 = vmatpush.bf16.msra.mxu0 %v1062
        %1123 = vmatpush.bf16.msra.mxu0 %v1060
        %1124 = vmatpush.bf16.msra.mxu0 %v1058
        %1125 = vmatpush.bf16.msra.mxu0 %v1056
        %1126 = vmatmul.bf16.gmra.mxu0 %v709
        %v1127 = vpop.f32.mrf.mxu0
        %v1128 = vadd.f32 %v1114, %v1127
        %v1129 = vpop.f32.mrf.mxu0
        %v1130 = vadd.f32 %v1116, %v1129
        %1131 = vdwg.mxu0
        %1132 = vmatpush.bf16.msra.mxu0 %v1055
        %1133 = vmatpush.bf16.msra.mxu0 %v1053
        %1134 = vmatpush.bf16.msra.mxu0 %v1051
        %1135 = vmatpush.bf16.msra.mxu0 %v1049
        %1136 = vmatpush.bf16.msra.mxu0 %v1047
        %1137 = vmatpush.bf16.msra.mxu0 %v1045
        %1138 = vmatpush.bf16.msra.mxu0 %v1043
        %1139 = vmatpush.bf16.msra.mxu0 %v1041
        %1140 = vmatmul.bf16.gmra.mxu0 %v708
        %v1141 = vpop.f32.mrf.mxu0
        %v1142 = vadd.f32 %v938, %v1141
        %v1143 = vpop.f32.mrf.mxu0
        %v1144 = vadd.f32 %v940, %v1143
        %1145 = vdwg.mxu0
        %1146 = vmatpush.bf16.msra.mxu0 %v1071
        %1147 = vmatpush.bf16.msra.mxu0 %v1069
        %1148 = vmatpush.bf16.msra.mxu0 %v1067
        %1149 = vmatpush.bf16.msra.mxu0 %v1065
        %1150 = vmatpush.bf16.msra.mxu0 %v1063
        %1151 = vmatpush.bf16.msra.mxu0 %v1061
        %1152 = vmatpush.bf16.msra.mxu0 %v1059
        %1153 = vmatpush.bf16.msra.mxu0 %v1057
        %1154 = vmatmul.bf16.gmra.mxu0 %v709
        %v1155 = vpop.f32.mrf.mxu0
        %v1156 = vadd.f32 %v1142, %v1155
        %v1157 = vpop.f32.mrf.mxu0
        %v1158 = vadd.f32 %v1144, %v1157
        %1159 = vdwg.mxu0
        %v1160 = vld [vmem:[#allocation7 + $0x200] sm:$0xff]
        %v1161 = vld [vmem:[#allocation7 + $0x208] sm:$0xff]
        %v1162 = vld [vmem:[#allocation7 + $0x210] sm:$0xff]
        %v1163 = vld [vmem:[#allocation7 + $0x218] sm:$0xff]
        %v1164 = vld [vmem:[#allocation7 + $0x220] sm:$0xff]
        %v1165 = vld [vmem:[#allocation7 + $0x228] sm:$0xff]
        %v1166 = vld [vmem:[#allocation7 + $0x230] sm:$0xff]
        %v1167 = vld [vmem:[#allocation7 + $0x238] sm:$0xff]
        %v1168 = vld [vmem:[#allocation7 + $0x240] sm:$0xff]
        %v1169 = vld [vmem:[#allocation7 + $0x248] sm:$0xff]
        %v1170 = vld [vmem:[#allocation7 + $0x250] sm:$0xff]
        %v1171 = vld [vmem:[#allocation7 + $0x258] sm:$0xff]
        %v1172 = vld [vmem:[#allocation7 + $0x260] sm:$0xff]
        %v1173 = vld [vmem:[#allocation7 + $0x268] sm:$0xff]
        %v1174 = vld [vmem:[#allocation7 + $0x270] sm:$0xff]
        %v1175 = vld [vmem:[#allocation7 + $0x278] sm:$0xff]
        %v1176 = vld [vmem:[#allocation7 + $0x280] sm:$0xff]
        %v1177 = vld [vmem:[#allocation7 + $0x288] sm:$0xff]
        %v1178 = vld [vmem:[#allocation7 + $0x290] sm:$0xff]
        %v1179 = vld [vmem:[#allocation7 + $0x298] sm:$0xff]
        %v1180 = vld [vmem:[#allocation7 + $0x2a0] sm:$0xff]
        %v1181 = vld [vmem:[#allocation7 + $0x2a8] sm:$0xff]
        %v1182 = vld [vmem:[#allocation7 + $0x2b0] sm:$0xff]
        %v1183 = vld [vmem:[#allocation7 + $0x2b8] sm:$0xff]
        %v1184 = vld [vmem:[#allocation7 + $0x2c0] sm:$0xff]
        %v1185 = vld [vmem:[#allocation7 + $0x2c8] sm:$0xff]
        %v1186 = vld [vmem:[#allocation7 + $0x2d0] sm:$0xff]
        %v1187 = vld [vmem:[#allocation7 + $0x2d8] sm:$0xff]
        %v1188 = vld [vmem:[#allocation7 + $0x2e0] sm:$0xff]
        %v1189 = vld [vmem:[#allocation7 + $0x2e8] sm:$0xff]
        %v1190 = vld [vmem:[#allocation7 + $0x2f0] sm:$0xff]
        %v1191 = vld [vmem:[#allocation7 + $0x2f8] sm:$0xff]
        %v1192 = vrot.slane %v708, 1
        %v1193 = vrot.slane %v709, 1
        %v1228 = vunpack.c.l.b16 %v1160
        %v1229 = vunpack.c.h.b16 %v1160
        %v1230 = vunpack.c.l.b16 %v1161
        %v1231 = vunpack.c.h.b16 %v1161
        %v1232 = vunpack.c.l.b16 %v1162
        %v1233 = vunpack.c.h.b16 %v1162
        %v1234 = vunpack.c.l.b16 %v1163
        %v1235 = vunpack.c.h.b16 %v1163
        %v1236 = vunpack.c.l.b16 %v1164
        %v1237 = vunpack.c.h.b16 %v1164
        %v1238 = vunpack.c.l.b16 %v1165
        %v1239 = vunpack.c.h.b16 %v1165
        %v1240 = vunpack.c.l.b16 %v1166
        %v1241 = vunpack.c.h.b16 %v1166
        %v1242 = vunpack.c.l.b16 %v1167
        %v1243 = vunpack.c.h.b16 %v1167
        %v1244 = vunpack.c.l.b16 %v1168
        %v1245 = vunpack.c.h.b16 %v1168
        %v1246 = vunpack.c.l.b16 %v1169
        %v1247 = vunpack.c.h.b16 %v1169
        %v1248 = vunpack.c.l.b16 %v1170
        %v1249 = vunpack.c.h.b16 %v1170
        %v1250 = vunpack.c.l.b16 %v1171
        %v1251 = vunpack.c.h.b16 %v1171
        %v1252 = vunpack.c.l.b16 %v1172
        %v1253 = vunpack.c.h.b16 %v1172
        %v1254 = vunpack.c.l.b16 %v1173
        %v1255 = vunpack.c.h.b16 %v1173
        %v1256 = vunpack.c.l.b16 %v1174
        %v1257 = vunpack.c.h.b16 %v1174
        %v1258 = vunpack.c.l.b16 %v1175
        %v1259 = vunpack.c.h.b16 %v1175
        %v1260 = vunpack.c.l.b16 %v1176
        %v1261 = vunpack.c.h.b16 %v1176
        %v1262 = vunpack.c.l.b16 %v1177
        %v1263 = vunpack.c.h.b16 %v1177
        %v1264 = vunpack.c.l.b16 %v1178
        %v1265 = vunpack.c.h.b16 %v1178
        %v1266 = vunpack.c.l.b16 %v1179
        %v1267 = vunpack.c.h.b16 %v1179
        %v1268 = vunpack.c.l.b16 %v1180
        %v1269 = vunpack.c.h.b16 %v1180
        %v1270 = vunpack.c.l.b16 %v1181
        %v1271 = vunpack.c.h.b16 %v1181
        %v1272 = vunpack.c.l.b16 %v1182
        %v1273 = vunpack.c.h.b16 %v1182
        %v1274 = vunpack.c.l.b16 %v1183
        %v1275 = vunpack.c.h.b16 %v1183
        %v1276 = vunpack.c.l.b16 %v1184
        %v1277 = vunpack.c.h.b16 %v1184
        %v1278 = vunpack.c.l.b16 %v1185
        %v1279 = vunpack.c.h.b16 %v1185
        %v1280 = vunpack.c.l.b16 %v1186
        %v1281 = vunpack.c.h.b16 %v1186
        %v1282 = vunpack.c.l.b16 %v1187
        %v1283 = vunpack.c.h.b16 %v1187
        %v1284 = vunpack.c.l.b16 %v1188
        %v1285 = vunpack.c.h.b16 %v1188
        %v1286 = vunpack.c.l.b16 %v1189
        %v1287 = vunpack.c.h.b16 %v1189
        %v1288 = vunpack.c.l.b16 %v1190
        %v1289 = vunpack.c.h.b16 %v1190
        %v1290 = vunpack.c.l.b16 %v1191
        %v1291 = vunpack.c.h.b16 %v1191
        %v1292 = vpack.c.b16 %v1230, %v1228
        %v1293 = vpack.c.b16 %v1231, %v1229
        %v1294 = vpack.c.b16 %v1234, %v1232
        %v1295 = vpack.c.b16 %v1235, %v1233
        %v1296 = vpack.c.b16 %v1238, %v1236
        %v1297 = vpack.c.b16 %v1239, %v1237
        %v1298 = vpack.c.b16 %v1242, %v1240
        %v1299 = vpack.c.b16 %v1243, %v1241
        %v1300 = vpack.c.b16 %v1246, %v1244
        %v1301 = vpack.c.b16 %v1247, %v1245
        %v1302 = vpack.c.b16 %v1250, %v1248
        %v1303 = vpack.c.b16 %v1251, %v1249
        %v1304 = vpack.c.b16 %v1254, %v1252
        %v1305 = vpack.c.b16 %v1255, %v1253
        %v1306 = vpack.c.b16 %v1258, %v1256
        %v1307 = vpack.c.b16 %v1259, %v1257
        %v1308 = vpack.c.b16 %v1262, %v1260
        %v1309 = vpack.c.b16 %v1263, %v1261
        %v1310 = vpack.c.b16 %v1266, %v1264
        %v1311 = vpack.c.b16 %v1267, %v1265
        %v1312 = vpack.c.b16 %v1270, %v1268
        %v1313 = vpack.c.b16 %v1271, %v1269
        %v1314 = vpack.c.b16 %v1274, %v1272
        %v1315 = vpack.c.b16 %v1275, %v1273
        %v1316 = vpack.c.b16 %v1278, %v1276
        %v1317 = vpack.c.b16 %v1279, %v1277
        %v1318 = vpack.c.b16 %v1282, %v1280
        %v1319 = vpack.c.b16 %v1283, %v1281
        %v1320 = vpack.c.b16 %v1286, %v1284
        %v1321 = vpack.c.b16 %v1287, %v1285
        %v1322 = vpack.c.b16 %v1290, %v1288
        %v1323 = vpack.c.b16 %v1291, %v1289
        %1356 = vmatpush.bf16.msra.mxu0 %v1306
        %1357 = vmatpush.bf16.msra.mxu0 %v1304
        %1358 = vmatpush.bf16.msra.mxu0 %v1302
        %1359 = vmatpush.bf16.msra.mxu0 %v1300
        %1360 = vmatpush.bf16.msra.mxu0 %v1298
        %1361 = vmatpush.bf16.msra.mxu0 %v1296
        %1362 = vmatpush.bf16.msra.mxu0 %v1294
        %1363 = vmatpush.bf16.msra.mxu0 %v1292
        %1364 = vmatmul.bf16.gmra.mxu0 %v1192
        %v1365 = vpop.f32.mrf.mxu0
        %v1366 = vadd.f32 0.0, %v1365
        %v1367 = vpop.f32.mrf.mxu0
        %v1368 = vadd.f32 0.0, %v1367
        %1369 = vdwg.mxu0
        %1370 = vmatpush.bf16.msra.mxu0 %v1322
        %1371 = vmatpush.bf16.msra.mxu0 %v1320
        %1372 = vmatpush.bf16.msra.mxu0 %v1318
        %1373 = vmatpush.bf16.msra.mxu0 %v1316
        %1374 = vmatpush.bf16.msra.mxu0 %v1314
        %1375 = vmatpush.bf16.msra.mxu0 %v1312
        %1376 = vmatpush.bf16.msra.mxu0 %v1310
        %1377 = vmatpush.bf16.msra.mxu0 %v1308
        %1378 = vmatmul.bf16.gmra.mxu0 %v1193
        %v1379 = vpop.f32.mrf.mxu0
        %v1380 = vadd.f32 %v1366, %v1379
        %v1381 = vpop.f32.mrf.mxu0
        %v1382 = vadd.f32 %v1368, %v1381
        %1383 = vdwg.mxu0
        %1384 = vmatpush.bf16.msra.mxu0 %v1307
        %1385 = vmatpush.bf16.msra.mxu0 %v1305
        %1386 = vmatpush.bf16.msra.mxu0 %v1303
        %1387 = vmatpush.bf16.msra.mxu0 %v1301
        %1388 = vmatpush.bf16.msra.mxu0 %v1299
        %1389 = vmatpush.bf16.msra.mxu0 %v1297
        %1390 = vmatpush.bf16.msra.mxu0 %v1295
        %1391 = vmatpush.bf16.msra.mxu0 %v1293
        %1392 = vmatmul.bf16.gmra.mxu0 %v1192
        %v1393 = vpop.f32.mrf.mxu0
        %v1394 = vadd.f32 0.0, %v1393
        %v1395 = vpop.f32.mrf.mxu0
        %v1396 = vadd.f32 0.0, %v1395
        %1397 = vdwg.mxu0
        %1398 = vmatpush.bf16.msra.mxu0 %v1323
        %1399 = vmatpush.bf16.msra.mxu0 %v1321
        %1400 = vmatpush.bf16.msra.mxu0 %v1319
        %1401 = vmatpush.bf16.msra.mxu0 %v1317
        %1402 = vmatpush.bf16.msra.mxu0 %v1315
        %1403 = vmatpush.bf16.msra.mxu0 %v1313
        %1404 = vmatpush.bf16.msra.mxu0 %v1311
        %1405 = vmatpush.bf16.msra.mxu0 %v1309
        %1406 = vmatmul.bf16.gmra.mxu0 %v1193
        %v1407 = vpop.f32.mrf.mxu0
        %v1408 = vadd.f32 %v1394, %v1407
        %v1409 = vpop.f32.mrf.mxu0
        %v1410 = vadd.f32 %v1396, %v1409
        %1411 = vdwg.mxu0
        %v1412 = vadd.f32 %v1128, %v1380
        %v1413 = vadd.f32 %v1156, %v1408
        %v1414 = vadd.f32 %v1130, %v1382
        %v1415 = vadd.f32 %v1158, %v1410
        %v1416 = vld [vmem:[%s5] sm:$0x3]
        %v1418 = vperm.slane %v1416, 0
        %v1419 = vperm.slane %v1416, 1
        %v1422 = vmul.f32 %v1412, %v1418
        %v1423 = vmul.f32 %v1413, %v1419
        %v1424 = vmul.f32 %v1414, %v1418
        %v1425 = vmul.f32 %v1415, %v1419
        %v1426 = vld [vmem:[#allocation9] sm:$0x3]
        %v1428 = vperm.slane %v1426, 0
        %v1429 = vperm.slane %v1426, 1
        %v1432 = vadd.f32 %v1422, %v1428
        %v1433 = vadd.f32 %v1423, %v1429
        %v1434 = vadd.f32 %v1424, %v1428
        %v1435 = vadd.f32 %v1425, %v1429
        %v1436 = vpack.c.bf16 %v1434, %v1432
        %v1437 = vpack.c.bf16 %v1435, %v1433
        %v1438 = vld [vmem:[#allocation10] sm:$0xff]
        %v1439 = vld [vmem:[#allocation10 + $0x8] sm:$0xff]
        %v1440 = vld [vmem:[#allocation10 + $0x10] sm:$0xff]
        %v1441 = vld [vmem:[#allocation10 + $0x18] sm:$0xff]
        %v1442 = vld [vmem:[#allocation10 + $0x20] sm:$0xff]
        %v1443 = vld [vmem:[#allocation10 + $0x28] sm:$0xff]
        %v1444 = vld [vmem:[#allocation10 + $0x30] sm:$0xff]
        %v1445 = vld [vmem:[#allocation10 + $0x38] sm:$0xff]
        %v1446 = vld [vmem:[#allocation10 + $0x40] sm:$0xff]
        %v1447 = vld [vmem:[#allocation10 + $0x48] sm:$0xff]
        %v1448 = vld [vmem:[#allocation10 + $0x50] sm:$0xff]
        %v1449 = vld [vmem:[#allocation10 + $0x58] sm:$0xff]
        %v1450 = vld [vmem:[#allocation10 + $0x60] sm:$0xff]
        %v1451 = vld [vmem:[#allocation10 + $0x68] sm:$0xff]
        %v1452 = vld [vmem:[#allocation10 + $0x70] sm:$0xff]
        %v1453 = vld [vmem:[#allocation10 + $0x78] sm:$0xff]
        %v1454 = vld [vmem:[#allocation10 + $0x80] sm:$0xff]
        %v1455 = vld [vmem:[#allocation10 + $0x88] sm:$0xff]
        %v1456 = vld [vmem:[#allocation10 + $0x90] sm:$0xff]
        %v1457 = vld [vmem:[#allocation10 + $0x98] sm:$0xff]
        %v1458 = vld [vmem:[#allocation10 + $0xa0] sm:$0xff]
        %v1459 = vld [vmem:[#allocation10 + $0xa8] sm:$0xff]
        %v1460 = vld [vmem:[#allocation10 + $0xb0] sm:$0xff]
        %v1461 = vld [vmem:[#allocation10 + $0xb8] sm:$0xff]
        %v1462 = vld [vmem:[#allocation10 + $0xc0] sm:$0xff]
        %v1463 = vld [vmem:[#allocation10 + $0xc8] sm:$0xff]
        %v1464 = vld [vmem:[#allocation10 + $0xd0] sm:$0xff]
        %v1465 = vld [vmem:[#allocation10 + $0xd8] sm:$0xff]
        %v1466 = vld [vmem:[#allocation10 + $0xe0] sm:$0xff]
        %v1467 = vld [vmem:[#allocation10 + $0xe8] sm:$0xff]
        %v1468 = vld [vmem:[#allocation10 + $0xf0] sm:$0xff]
        %v1469 = vld [vmem:[#allocation10 + $0xf8] sm:$0xff]
        %v1502 = vunpack.c.l.b16 %v1438
        %v1503 = vunpack.c.h.b16 %v1438
        %v1504 = vunpack.c.l.b16 %v1439
        %v1505 = vunpack.c.h.b16 %v1439
        %v1506 = vunpack.c.l.b16 %v1440
        %v1507 = vunpack.c.h.b16 %v1440
        %v1508 = vunpack.c.l.b16 %v1441
        %v1509 = vunpack.c.h.b16 %v1441
        %v1510 = vunpack.c.l.b16 %v1442
        %v1511 = vunpack.c.h.b16 %v1442
        %v1512 = vunpack.c.l.b16 %v1443
        %v1513 = vunpack.c.h.b16 %v1443
        %v1514 = vunpack.c.l.b16 %v1444
        %v1515 = vunpack.c.h.b16 %v1444
        %v1516 = vunpack.c.l.b16 %v1445
        %v1517 = vunpack.c.h.b16 %v1445
        %v1518 = vunpack.c.l.b16 %v1446
        %v1519 = vunpack.c.h.b16 %v1446
        %v1520 = vunpack.c.l.b16 %v1447
        %v1521 = vunpack.c.h.b16 %v1447
        %v1522 = vunpack.c.l.b16 %v1448
        %v1523 = vunpack.c.h.b16 %v1448
        %v1524 = vunpack.c.l.b16 %v1449
        %v1525 = vunpack.c.h.b16 %v1449
        %v1526 = vunpack.c.l.b16 %v1450
        %v1527 = vunpack.c.h.b16 %v1450
        %v1528 = vunpack.c.l.b16 %v1451
        %v1529 = vunpack.c.h.b16 %v1451
        %v1530 = vunpack.c.l.b16 %v1452
        %v1531 = vunpack.c.h.b16 %v1452
        %v1532 = vunpack.c.l.b16 %v1453
        %v1533 = vunpack.c.h.b16 %v1453
        %v1534 = vunpack.c.l.b16 %v1454
        %v1535 = vunpack.c.h.b16 %v1454
        %v1536 = vunpack.c.l.b16 %v1455
        %v1537 = vunpack.c.h.b16 %v1455
        %v1538 = vunpack.c.l.b16 %v1456
        %v1539 = vunpack.c.h.b16 %v1456
        %v1540 = vunpack.c.l.b16 %v1457
        %v1541 = vunpack.c.h.b16 %v1457
        %v1542 = vunpack.c.l.b16 %v1458
        %v1543 = vunpack.c.h.b16 %v1458
        %v1544 = vunpack.c.l.b16 %v1459
        %v1545 = vunpack.c.h.b16 %v1459
        %v1546 = vunpack.c.l.b16 %v1460
        %v1547 = vunpack.c.h.b16 %v1460
        %v1548 = vunpack.c.l.b16 %v1461
        %v1549 = vunpack.c.h.b16 %v1461
        %v1550 = vunpack.c.l.b16 %v1462
        %v1551 = vunpack.c.h.b16 %v1462
        %v1552 = vunpack.c.l.b16 %v1463
        %v1553 = vunpack.c.h.b16 %v1463
        %v1554 = vunpack.c.l.b16 %v1464
        %v1555 = vunpack.c.h.b16 %v1464
        %v1556 = vunpack.c.l.b16 %v1465
        %v1557 = vunpack.c.h.b16 %v1465
        %v1558 = vunpack.c.l.b16 %v1466
        %v1559 = vunpack.c.h.b16 %v1466
        %v1560 = vunpack.c.l.b16 %v1467
        %v1561 = vunpack.c.h.b16 %v1467
        %v1562 = vunpack.c.l.b16 %v1468
        %v1563 = vunpack.c.h.b16 %v1468
        %v1564 = vunpack.c.l.b16 %v1469
        %v1565 = vunpack.c.h.b16 %v1469
        %v1566 = vpack.c.b16 %v1504, %v1502
        %v1567 = vpack.c.b16 %v1505, %v1503
        %v1568 = vpack.c.b16 %v1508, %v1506
        %v1569 = vpack.c.b16 %v1509, %v1507
        %v1570 = vpack.c.b16 %v1512, %v1510
        %v1571 = vpack.c.b16 %v1513, %v1511
        %v1572 = vpack.c.b16 %v1516, %v1514
        %v1573 = vpack.c.b16 %v1517, %v1515
        %v1574 = vpack.c.b16 %v1520, %v1518
        %v1575 = vpack.c.b16 %v1521, %v1519
        %v1576 = vpack.c.b16 %v1524, %v1522
        %v1577 = vpack.c.b16 %v1525, %v1523
        %v1578 = vpack.c.b16 %v1528, %v1526
        %v1579 = vpack.c.b16 %v1529, %v1527
        %v1580 = vpack.c.b16 %v1532, %v1530
        %v1581 = vpack.c.b16 %v1533, %v1531
        %v1582 = vpack.c.b16 %v1536, %v1534
        %v1583 = vpack.c.b16 %v1537, %v1535
        %v1584 = vpack.c.b16 %v1540, %v1538
        %v1585 = vpack.c.b16 %v1541, %v1539
        %v1586 = vpack.c.b16 %v1544, %v1542
        %v1587 = vpack.c.b16 %v1545, %v1543
        %v1588 = vpack.c.b16 %v1548, %v1546
        %v1589 = vpack.c.b16 %v1549, %v1547
        %v1590 = vpack.c.b16 %v1552, %v1550
        %v1591 = vpack.c.b16 %v1553, %v1551
        %v1592 = vpack.c.b16 %v1556, %v1554
        %v1593 = vpack.c.b16 %v1557, %v1555
        %v1594 = vpack.c.b16 %v1560, %v1558
        %v1595 = vpack.c.b16 %v1561, %v1559
        %v1596 = vpack.c.b16 %v1564, %v1562
        %v1597 = vpack.c.b16 %v1565, %v1563
        %1630 = vmatpush.bf16.msra.mxu0 %v1580
        %1631 = vmatpush.bf16.msra.mxu0 %v1578
        %1632 = vmatpush.bf16.msra.mxu0 %v1576
        %1633 = vmatpush.bf16.msra.mxu0 %v1574
        %1634 = vmatpush.bf16.msra.mxu0 %v1572
        %1635 = vmatpush.bf16.msra.mxu0 %v1570
        %1636 = vmatpush.bf16.msra.mxu0 %v1568
        %1637 = vmatpush.bf16.msra.mxu0 %v1566
        %1638 = vmatmul.bf16.gmra.mxu0 %v1436
        %v1639 = vpop.f32.mrf.mxu0
        %v1640 = vadd.f32 0.0, %v1639
        %v1641 = vpop.f32.mrf.mxu0
        %v1642 = vadd.f32 0.0, %v1641
        %1643 = vdwg.mxu0
        %1644 = vmatpush.bf16.msra.mxu0 %v1596
        %1645 = vmatpush.bf16.msra.mxu0 %v1594
        %1646 = vmatpush.bf16.msra.mxu0 %v1592
        %1647 = vmatpush.bf16.msra.mxu0 %v1590
        %1648 = vmatpush.bf16.msra.mxu0 %v1588
        %1649 = vmatpush.bf16.msra.mxu0 %v1586
        %1650 = vmatpush.bf16.msra.mxu0 %v1584
        %1651 = vmatpush.bf16.msra.mxu0 %v1582
        %1652 = vmatmul.bf16.gmra.mxu0 %v1437
        %v1653 = vpop.f32.mrf.mxu0
        %v1654 = vadd.f32 %v1640, %v1653
        %v1655 = vpop.f32.mrf.mxu0
        %v1656 = vadd.f32 %v1642, %v1655
        %1657 = vdwg.mxu0
        %1658 = vmatpush.bf16.msra.mxu0 %v1581
        %1659 = vmatpush.bf16.msra.mxu0 %v1579
        %1660 = vmatpush.bf16.msra.mxu0 %v1577
        %1661 = vmatpush.bf16.msra.mxu0 %v1575
        %1662 = vmatpush.bf16.msra.mxu0 %v1573
        %1663 = vmatpush.bf16.msra.mxu0 %v1571
        %1664 = vmatpush.bf16.msra.mxu0 %v1569
        %1665 = vmatpush.bf16.msra.mxu0 %v1567
        %1666 = vmatmul.bf16.gmra.mxu0 %v1436
        %v1667 = vpop.f32.mrf.mxu0
        %v1668 = vadd.f32 0.0, %v1667
        %v1669 = vpop.f32.mrf.mxu0
        %v1670 = vadd.f32 0.0, %v1669
        %1671 = vdwg.mxu0
        %1672 = vmatpush.bf16.msra.mxu0 %v1597
        %1673 = vmatpush.bf16.msra.mxu0 %v1595
        %1674 = vmatpush.bf16.msra.mxu0 %v1593
        %1675 = vmatpush.bf16.msra.mxu0 %v1591
        %1676 = vmatpush.bf16.msra.mxu0 %v1589
        %1677 = vmatpush.bf16.msra.mxu0 %v1587
        %1678 = vmatpush.bf16.msra.mxu0 %v1585
        %1679 = vmatpush.bf16.msra.mxu0 %v1583
        %1680 = vmatmul.bf16.gmra.mxu0 %v1437
        %v1681 = vpop.f32.mrf.mxu0
        %v1682 = vadd.f32 %v1668, %v1681
        %v1683 = vpop.f32.mrf.mxu0
        %v1684 = vadd.f32 %v1670, %v1683
        %1685 = vdwg.mxu0
        %v1686 = vld [vmem:[%s8] sm:$0x3]
        %v1688 = vperm.slane %v1686, 0
        %v1689 = vperm.slane %v1686, 1
        %v1692 = vmul.f32 %v1654, %v1688
        %v1693 = vmul.f32 %v1682, %v1689
        %v1694 = vmul.f32 %v1656, %v1688
        %v1695 = vmul.f32 %v1684, %v1689
        %v1696 = vld [vmem:[%s9] sm:$0x3]
        %v1698 = vperm.slane %v1696, 0
        %v1699 = vperm.slane %v1696, 1
        %v1702 = vadd.f32 %v1692, %v1698
        %v1703 = vadd.f32 %v1693, %v1699
        %v1704 = vadd.f32 %v1694, %v1698
        %v1705 = vadd.f32 %v1695, %v1699
        %v1706 = vmax.f32 %v1702, 0.0
        %v1707 = vmax.f32 %v1703, 0.0
        %v1708 = vmax.f32 %v1704, 0.0
        %v1709 = vmax.f32 %v1705, 0.0
        %1710 = vst [vmem:[%s460] sm:$0xff] %v1706
        %1711 = vst [vmem:[%s460 + $0x8] sm:$0xff] %v1707
        %1712 = vst [vmem:[%s460 + $0x10] sm:$0xf] %v1708
        %1713 = vst [vmem:[%s460 + $0x18] sm:$0xf] %v1709
        %p1714 = scmp.lt.s32.totalorder %s27, 1
        %s1715 = scalar_select %p1714, %s27, 1
        %s1716 = smul.addr %s1715, 4
        %s1717 = smul.addr %s1716, 8
        %s1718 = scalar_lea.vmem %s10, %s1717
        // Predicated region
        $region85: #{tpu_custom_call.1} parent=59 // pred_check
          %p1719 = pneg %p260
        $region86: #{tpu_custom_call.1} parent=59 // pred_check_branch
          %1721 = sbr.rel (%p1719) target = $region88
        $region87: #{tpu_custom_call.1} parent=59 // pred_region
          _
        $region88: #{tpu_custom_call.1} parent=59 // pred_fallthru
          _
      $region60: #{tpu_custom_call.1} parent=5 // pred_fallthru
        _
      %p1722 = scmp.le.s32.totalorder 2, %s22
      // Predicated region
      $region89: #{tpu_custom_call.1} parent=5 // pred_check
        %p1723 = pneg %p1722
      $region90: #{tpu_custom_call.1} parent=5 // pred_check_branch
        %1725 = sbr.rel (%p1723) target = $region92
      $region91: #{tpu_custom_call.1} parent=5 // pred_region
        %s1726 = ssub.s32 %s22, 2
        // Predicated region
        $region93: #{tpu_custom_call.1} parent=91 // pred_check
          %p1727 = pneg %p266
        $region94: #{tpu_custom_call.1} parent=91 // pred_check_branch
          %1729 = sbr.rel (%p1727) target = $region96
        $region95: #{tpu_custom_call.1} parent=91 // pred_region
          %p1730 = scmp.lt.s32.totalorder %s28, 1
          %s1731 = scalar_select %p1730, %s28, 1
          %s1732 = smul.addr %s1731, 4
          %s1733 = smul.addr %s1732, 8
          %s1734 = scalar_lea.vmem %s10, %s1733
        $region96: #{tpu_custom_call.1} parent=91 // pred_fallthru
          _
      $region92: #{tpu_custom_call.1} parent=5 // pred_fallthru
        _
    $region6: #{tpu_custom_call.1} parent=1 // loop_footer
      %s26 = sadd.s32 1, %s22
    $region7: #{tpu_custom_call.1} parent=1 // loop_footer_branch
      %21 = sbr.rel target = $region3
    $region8: #{tpu_custom_call.1} parent=1 // loop_exit
      _
    %1735 = vsyncpa [#allocation3], 1
    %s1736 = scalar_lea.sflag [#allocation3], 1
    %1737 = vsyncpa %s1736, 1
    %1738 = vsyncpa [#allocation5], 1
    %1739 = vsyncpa [#allocation8], 1
    %1740 = vsyncpa [#allocation11], 1

</llo_original>
